<compile_context>
chip_gen: v6e
topology: v6e:2x2x1
jax: 0.10.0
libtpu: 0.0.40
codegen_flags: <defaults>
</compile_context>

<pallas_src>
import functools

import jax
import jax.numpy as jnp
from jax import lax
from jax.experimental import pallas as pl
from jax.experimental.pallas import tpu as pltpu


_LN_EPS = 1e-5


@functools.lru_cache(maxsize=None)
def _vmem_limit_bytes():
    """Per-generation scoped-VMEM budget: physical capacity minus headroom."""
    try:
        cap = int(pltpu.get_tpu_info().vmem_capacity_bytes)
    except Exception:
        cap = 128 * 1024 * 1024
    return max(32 * 1024 * 1024, cap - 16 * 1024 * 1024)


def _compiler_params(semantics):
    return pltpu.CompilerParams(
        dimension_semantics=semantics,
        vmem_limit_bytes=_vmem_limit_bytes(),
    )


def _layernorm_f32(x, gamma, beta, eps=_LN_EPS):
    """Row-wise LayerNorm in f32 (matches nn.LayerNorm)."""
    x = x.astype(jnp.float32)
    mean = jnp.mean(x, axis=-1, keepdims=True)
    var = jnp.mean((x - mean) ** 2, axis=-1, keepdims=True)
    return (x - mean) * jax.lax.rsqrt(var + eps) * gamma + beta


# --------------- fused kernel 1: one full transformer block per call -------------

def _block_kernel(h_ref, ln1g_ref, ln1b_ref, qkvw_ref, qkvb_ref,
                  projw_ref, projb_ref, ln2g_ref, ln2b_ref,
                  fcw_ref, fcb_ref, fcpw_ref, fcpb_ref, o_ref,
                  *, n_head, scale):
    resid = h_ref[0].astype(jnp.float32)                      # (T, D) f32
    T, D = resid.shape
    Dh = D // n_head
    cdt = qkvw_ref.dtype                                      # bf16 compute dtype

    # ---- LN1 + QKV (one MXU matmul) ----
    xn = _layernorm_f32(resid, ln1g_ref[...], ln1b_ref[...])
    qkv = (jnp.dot(xn.astype(cdt), qkvw_ref[...],
                   preferred_element_type=jnp.float32) + qkvb_ref[...])   # (T, 3D)

    # ---- causal multi-head attention ----
    row = lax.broadcasted_iota(jnp.int32, (T, T), 0)
    col = lax.broadcasted_iota(jnp.int32, (T, T), 1)
    causal = row >= col

    # TODO(synk): for production T (~1024) replace the full (T,T) score block and
    # the static Python head loop with a KV-tiled flash-style lax.fori_loop
    # (online softmax) so the working set stays bounded.
    heads = []
    for hh in range(n_head):
        q = qkv[:, hh * Dh:(hh + 1) * Dh].astype(cdt)
        k = qkv[:, D + hh * Dh:D + (hh + 1) * Dh].astype(cdt)
        v = qkv[:, 2 * D + hh * Dh:2 * D + (hh + 1) * Dh].astype(cdt)

        s = jnp.dot(q, k.T, preferred_element_type=jnp.float32) * scale
        s = jnp.where(causal, s, jnp.float32(-1e30))
        s = s - jnp.max(s, axis=-1, keepdims=True)
        p = jnp.exp(s)
        p = p / jnp.sum(p, axis=-1, keepdims=True)
        heads.append(jnp.dot(p.astype(cdt), v, preferred_element_type=jnp.float32))
    attn = jnp.concatenate(heads, axis=-1)                    # (T, D) f32

    # ---- single D-contraction output projection (full MXU depth) + residual ----
    h1 = resid + projb_ref[...] + jnp.dot(attn.astype(cdt), projw_ref[...],
                                          preferred_element_type=jnp.float32)

    # ---- LN2 + GELU MLP + residual ----
    xn2 = _layernorm_f32(h1, ln2g_ref[...], ln2b_ref[...])
    mid = (jnp.dot(xn2.astype(cdt), fcw_ref[...],
                   preferred_element_type=jnp.float32) + fcb_ref[...])
    mid = jax.nn.gelu(mid, approximate=True)                  # GPT-2 "gelu_new"
    h2 = h1 + fcpb_ref[...] + jnp.dot(mid.astype(cdt), fcpw_ref[...],
                                      preferred_element_type=jnp.float32)

    o_ref[0] = h2.astype(o_ref.dtype)


def transformer_block(h, blk, *, n_head):
    # TODO(synk): at production shapes the per-layer weights (~14 MB bf16) are
    # fetched cold each call; a cross-call prefetch (semaphore handoff) would
    # hide that DMA behind the previous layer's compute.
    B, T, D = h.shape
    F = blk["fc_w"].shape[1]
    scale = 1.0 / float(D // n_head) ** 0.5
    return pl.pallas_call(
        functools.partial(_block_kernel, n_head=n_head, scale=scale),
        grid=(B,),
        in_specs=[
            pl.BlockSpec((1, T, D), lambda b: (b, 0, 0)),
            pl.BlockSpec((1, D), lambda b: (0, 0)),
            pl.BlockSpec((1, D), lambda b: (0, 0)),
            pl.BlockSpec((D, 3 * D), lambda b: (0, 0)),
            pl.BlockSpec((1, 3 * D), lambda b: (0, 0)),
            pl.BlockSpec((D, D), lambda b: (0, 0)),
            pl.BlockSpec((1, D), lambda b: (0, 0)),
            pl.BlockSpec((1, D), lambda b: (0, 0)),
            pl.BlockSpec((1, D), lambda b: (0, 0)),
            pl.BlockSpec((D, F), lambda b: (0, 0)),
            pl.BlockSpec((1, F), lambda b: (0, 0)),
            pl.BlockSpec((F, D), lambda b: (0, 0)),
            pl.BlockSpec((1, D), lambda b: (0, 0)),
        ],
        out_specs=pl.BlockSpec((1, T, D), lambda b: (b, 0, 0)),
        out_shape=jax.ShapeDtypeStruct((B, T, D), jnp.bfloat16),
        compiler_params=_compiler_params(("parallel",)),
    )(h,
      blk["ln1_g"].reshape(1, D), blk["ln1_b"].reshape(1, D),
      blk["qkv_w"], blk["qkv_b"].reshape(1, 3 * D),
      blk["proj_w"], blk["proj_b"].reshape(1, D),
      blk["ln2_g"].reshape(1, D), blk["ln2_b"].reshape(1, D),
      blk["fc_w"], blk["fc_b"].reshape(1, F),
      blk["fcp_w"], blk["fcp_b"].reshape(1, D))


# ------------- fused kernel 2: final LN + output head (row/N tiled) --------------

def _ln_head_kernel(h_ref, g_ref, b_ref, w_ref, wb_ref, o_ref, xn_scr):
    # LayerNorm computed once per row tile (j == 0), cached in VMEM, reused for
    # every N tile instead of being recomputed N//tn times.
    @pl.when(pl.program_id(1) == 0)
    def _():
        xn_scr[...] = _layernorm_f32(
            h_ref[...], g_ref[...], b_ref[...]).astype(xn_scr.dtype)

    o_ref[...] = (
        jnp.dot(xn_scr[...], w_ref[...], preferred_element_type=jnp.float32)
        + wb_ref[...]
    ).astype(o_ref.dtype)


def _pick_n_tile(n, max_tile=2048):
    """Largest lane-dense tile dividing n, preferring 256-multiples (v6e/v7x MXU
    width), falling back to 128-multiples, capped at max_tile."""
    if n <= max_tile:
        return n
    for align in (256, 128):
        t = max_tile - (max_tile % align)
        while t >= align:
            if n % t == 0:
                return t
            t -= align
    return n


def _pick_row_tile(r, max_tile=512):
    """Largest multiple-of-8 tile dividing r, capped at max_tile."""
    if r <= max_tile:
        return r
    t = max_tile - (max_tile % 8)
    while t >= 8:
        if r % t == 0:
            return t
        t -= 8
    return r


def ln_head(h, gamma, beta, w, wb):
    # TODO(synk): if the consumer tolerates it, emitting the head output in bf16
    # halves the dominant (B, T, output_dim) store traffic.
    B, T, D = h.shape
    N = w.shape[1]
    R = B * T
    hf = h.reshape(R, D)
    tn = _pick_n_tile(N)
    tr = _pick_row_tile(R)
    out = pl.pallas_call(
        _ln_head_kernel,
        grid=(R // tr, N // tn),
        in_specs=[
            pl.BlockSpec((tr, D), lambda i, j: (i, 0)),
            pl.BlockSpec((1, D), lambda i, j: (0, 0)),
            pl.BlockSpec((1, D), lambda i, j: (0, 0)),
            pl.BlockSpec((D, tn), lambda i, j: (0, j)),
            pl.BlockSpec((1, tn), lambda i, j: (0, j)),
        ],
        out_specs=pl.BlockSpec((tr, tn), lambda i, j: (i, j)),
        out_shape=jax.ShapeDtypeStruct((R, N), jnp.float32),
        scratch_shapes=[pltpu.VMEM((tr, D), jnp.bfloat16)],
        compiler_params=_compiler_params(("parallel", "arbitrary")),
    )(hf, gamma.reshape(1, D), beta.reshape(1, D), w, wb.reshape(1, N))
    return out.reshape(B, T, N)


# --------------------------- Model (parameters + forward) -----------------------

def init_params(key, *, n_layer, n_embd, n_head, n_ctx, n_inner, output_dim):
    """Deterministic synthetic GPT-2-style weights (no checkpoint loading)."""
    del n_head
    keys = jax.random.split(key, 3 + 8 * n_layer)
    ki = iter(keys)
    std = 0.02

    def rnd(shape, dtype=jnp.float32):
        return (std * jax.random.normal(next(ki), shape)).astype(dtype)

    params = {
        "wpe": rnd((n_ctx, n_embd)),
        "ln_f_g": jnp.ones((n_embd,), jnp.float32),
        "ln_f_b": jnp.zeros((n_embd,), jnp.float32),
        "out_w": rnd((n_embd, output_dim), jnp.bfloat16),
        "out_b": jnp.zeros((output_dim,), jnp.float32),
        "blocks": [],
    }
    for _ in range(n_layer):
        params["blocks"].append({
            "ln1_g": jnp.ones((n_embd,), jnp.float32),
            "ln1_b": jnp.zeros((n_embd,), jnp.float32),
            "qkv_w": rnd((n_embd, 3 * n_embd), jnp.bfloat16),
            "qkv_b": jnp.zeros((3 * n_embd,), jnp.float32),
            "proj_w": rnd((n_embd, n_embd), jnp.bfloat16),
            "proj_b": jnp.zeros((n_embd,), jnp.float32),
            "ln2_g": jnp.ones((n_embd,), jnp.float32),
            "ln2_b": jnp.zeros((n_embd,), jnp.float32),
            "fc_w": rnd((n_embd, n_inner), jnp.bfloat16),
            "fc_b": jnp.zeros((n_inner,), jnp.float32),
            "fcp_w": rnd((n_inner, n_embd), jnp.bfloat16),
            "fcp_b": jnp.zeros((n_embd,), jnp.float32),
        })
    return params


@functools.partial(jax.jit, static_argnames=("n_head",))
def forward_batch(params, x, *, n_head):
    """x: (B, T, D) batch of GeneralEmbeddings -> (B, T, output_dim)."""
    B, T, D = x.shape
    # Positional glue in f32, then bf16 inter-layer activations (halves the
    # per-layer HBM round-trip; matmul operands are bf16 anyway).
    h = (x.astype(jnp.float32) + params["wpe"][:T][None, :, :]).astype(jnp.bfloat16)
    for blk in params["blocks"]:
        h = transformer_block(h, blk, n_head=n_head)
    return ln_head(h, params["ln_f_g"], params["ln_f_b"],
                   params["out_w"], params["out_b"])


def generalist_forward(params, data, *, n_head):
    """Matches GeneralistModel.forward: list in -> list out.

    Samples of equal shape are stacked into one (B, T, D) batch so the whole
    group runs through a single gridded kernel chain (no per-sample relaunch).
    """
    # TODO(synk): GeneralEmbedding padding/attention masks are not modeled; each
    # sample is treated as a dense (T, D) embedding with full causal attention.
    outs = [None] * len(data)
    groups = {}
    for i, x in enumerate(data):
        groups.setdefault(tuple(x.shape), []).append(i)
    for _, idxs in groups.items():
        batch = jnp.stack([data[i] for i in idxs], axis=0)
        y = forward_batch(params, batch, n_head=n_head)
        for j, i in enumerate(idxs):
            outs[i] = y[j]
    return outs


# ------------------------------------- main --------------------------------------

if __name__ == "__main__":
    # Small synthetic GPT-2-ish config.
    # TODO(synk): demo D=32 / 3D=96 are not lane-dense (multiples of 128), so the
    # block-kernel stores are masked; at production D=768 this is satisfied.
    N_LAYER = 2
    N_EMBD = 32
    N_HEAD = 4
    N_CTX = 16          # model_max_length
    N_INNER = 4 * N_EMBD
    OUTPUT_DIM = 64     # stand-in for 33024
    T = 8               # sequence length per sample
    NUM_SAMPLES = 2

    key = jax.random.PRNGKey(0)
    pkey, dkey = jax.random.split(key)
    params = init_params(
        pkey, n_layer=N_LAYER, n_embd=N_EMBD, n_head=N_HEAD,
        n_ctx=N_CTX, n_inner=N_INNER, output_dim=OUTPUT_DIM)

    dkeys = jax.random.split(dkey, NUM_SAMPLES)
    data = [jax.random.normal(k, (T, N_EMBD), dtype=jnp.float32) for k in dkeys]

    outs = generalist_forward(params, data, n_head=N_HEAD)
    outs = [jax.block_until_ready(o) for o in outs]

    assert len(outs) == NUM_SAMPLES
    for o in outs:
        assert o.shape == (T, OUTPUT_DIM), o.shape
        assert o.dtype == jnp.float32
        assert bool(jnp.all(jnp.isfinite(o)))

    print("KERNEL_OK")
</pallas_src>

<mosaic_0001>
module attributes {stable_mosaic.version = 11 : i64} {
  func.func @_ln_head_kernel(%arg0: i32, %arg1: i32, %arg2: memref<16x32xbf16, #tpu.memory_space<vmem>>, %arg3: memref<1x32xf32, #tpu.memory_space<vmem>>, %arg4: memref<1x32xf32, #tpu.memory_space<vmem>>, %arg5: memref<32x64xbf16, #tpu.memory_space<vmem>>, %arg6: memref<1x64xf32, #tpu.memory_space<vmem>>, %arg7: memref<16x64xf32, #tpu.memory_space<vmem>>, %arg8: memref<16x32xbf16, #tpu.memory_space<vmem>>) attributes {dimension_semantics = [#tpu.dimension_semantics<parallel>, #tpu.dimension_semantics<arbitrary>], iteration_bounds = array<i64: 1, 1>, scalar_prefetch = 0 : i64, scratch_operands = 1 : i64, tpu.core_type = #tpu.core_type<tc>, window_params = [{transform_indices = @transform_0, window_bounds = array<i64: 16, 32>}, {pipeline_mode = #tpu.pipeline_mode<synchronous>, transform_indices = @transform_1, window_bounds = array<i64: 1, 32>}, {pipeline_mode = #tpu.pipeline_mode<synchronous>, transform_indices = @transform_2, window_bounds = array<i64: 1, 32>}, {transform_indices = @transform_3, window_bounds = array<i64: 32, 64>}, {transform_indices = @transform_4, window_bounds = array<i64: 1, 64>}, {transform_indices = @transform_5, window_bounds = array<i64: 16, 64>}]} {
    %c0_i32 = arith.constant 0 : i32
    %0 = arith.cmpi eq, %arg1, %c0_i32 : i32
    %1 = arith.extui %0 : i1 to i32
    %c0_i32_0 = arith.constant 0 : i32
    %2 = arith.cmpi ne, %1, %c0_i32_0 : i32
    scf.if %2 {
      %c0_8 = arith.constant 0 : index
      %c0_9 = arith.constant 0 : index
      %10 = vector.load %arg2[%c0_8, %c0_9] : memref<16x32xbf16, #tpu.memory_space<vmem>>, vector<16x32xbf16>
      %c0_10 = arith.constant 0 : index
      %c0_11 = arith.constant 0 : index
      %11 = vector.load %arg3[%c0_10, %c0_11] : memref<1x32xf32, #tpu.memory_space<vmem>>, vector<1x32xf32>
      %c0_12 = arith.constant 0 : index
      %c0_13 = arith.constant 0 : index
      %12 = vector.load %arg4[%c0_12, %c0_13] : memref<1x32xf32, #tpu.memory_space<vmem>>, vector<1x32xf32>
      %13 = arith.extf %10 : vector<16x32xbf16> to vector<16x32xf32>
      %cst_14 = arith.constant dense<0.000000e+00> : vector<16xf32>
      %14 = vector.multi_reduction <add>, %13, %cst_14 [1] : vector<16x32xf32> to vector<16xf32>
      %15 = vector.shape_cast %14 : vector<16xf32> to vector<16x1xf32>
      %cst_15 = arith.constant 3.200000e+01 : f32
      %16 = vector.broadcast %cst_15 : f32 to vector<16x1xf32>
      %17 = arith.divf %15, %16 : vector<16x1xf32>
      %18 = vector.broadcast %17 : vector<16x1xf32> to vector<16x32xf32>
      %19 = arith.subf %13, %18 : vector<16x32xf32>
      %20 = arith.mulf %19, %19 : vector<16x32xf32>
      %cst_16 = arith.constant dense<0.000000e+00> : vector<16xf32>
      %21 = vector.multi_reduction <add>, %20, %cst_16 [1] : vector<16x32xf32> to vector<16xf32>
      %22 = vector.shape_cast %21 : vector<16xf32> to vector<16x1xf32>
      %cst_17 = arith.constant 3.200000e+01 : f32
      %23 = vector.broadcast %cst_17 : f32 to vector<16x1xf32>
      %24 = arith.divf %22, %23 : vector<16x1xf32>
      %25 = vector.broadcast %17 : vector<16x1xf32> to vector<16x32xf32>
      %26 = arith.subf %13, %25 : vector<16x32xf32>
      %cst_18 = arith.constant 9.99999974E-6 : f32
      %27 = vector.broadcast %cst_18 : f32 to vector<16x1xf32>
      %28 = arith.addf %24, %27 : vector<16x1xf32>
      %29 = math.rsqrt %28 : vector<16x1xf32>
      %30 = vector.broadcast %29 : vector<16x1xf32> to vector<16x32xf32>
      %31 = arith.mulf %26, %30 : vector<16x32xf32>
      %32 = vector.broadcast %11 : vector<1x32xf32> to vector<16x32xf32>
      %33 = arith.mulf %31, %32 : vector<16x32xf32>
      %34 = vector.broadcast %12 : vector<1x32xf32> to vector<16x32xf32>
      %35 = arith.addf %33, %34 : vector<16x32xf32>
      %36 = arith.truncf %35 : vector<16x32xf32> to vector<16x32xbf16>
      %c0_19 = arith.constant 0 : index
      %c0_20 = arith.constant 0 : index
      %37 = vector.load %arg8[%c0_19, %c0_20] : memref<16x32xbf16, #tpu.memory_space<vmem>>, vector<16x32xbf16>
      tpu.vector_store %arg8[%c0_19, %c0_20], %36 {strides = array<i32>} : memref<16x32xbf16, #tpu.memory_space<vmem>>, vector<16x32xbf16>,
    } else {
    }
    %c0 = arith.constant 0 : index
    %c0_1 = arith.constant 0 : index
    %3 = vector.load %arg8[%c0, %c0_1] : memref<16x32xbf16, #tpu.memory_space<vmem>>, vector<16x32xbf16>
    %c0_2 = arith.constant 0 : index
    %c0_3 = arith.constant 0 : index
    %4 = vector.load %arg5[%c0_2, %c0_3] : memref<32x64xbf16, #tpu.memory_space<vmem>>, vector<32x64xbf16>
    %cst = arith.constant dense<0.000000e+00> : vector<16x64xf32>
    %5 = tpu.matmul %3, %4, %cst {dimension_numbers = #tpu.dot_dimension_numbers<[1], [0], [0], [1], [0, 0, 1, 1], [], []>} : vector<16x32xbf16>, vector<32x64xbf16>, vector<16x64xf32> -> vector<16x64xf32>
    %c0_4 = arith.constant 0 : index
    %c0_5 = arith.constant 0 : index
    %6 = vector.load %arg6[%c0_4, %c0_5] : memref<1x64xf32, #tpu.memory_space<vmem>>, vector<1x64xf32>
    %7 = vector.broadcast %6 : vector<1x64xf32> to vector<16x64xf32>
    %8 = arith.addf %5, %7 : vector<16x64xf32>
    %c0_6 = arith.constant 0 : index
    %c0_7 = arith.constant 0 : index
    %9 = vector.load %arg7[%c0_6, %c0_7] : memref<16x64xf32, #tpu.memory_space<vmem>>, vector<16x64xf32>
    tpu.vector_store %arg7[%c0_6, %c0_7], %8 {strides = array<i32>} : memref<16x64xf32, #tpu.memory_space<vmem>>, vector<16x64xf32>,
    return
  }
  func.func @transform_0(%arg0: i32, %arg1: i32) -> (i32, i32) {
    %c0_i32 = arith.constant 0 : i32
    %c0_i32_0 = arith.constant 0 : i32
    return %arg0, %c0_i32 : i32, i32
  }
  func.func @transform_1(%arg0: i32, %arg1: i32) -> (i32, i32) {
    %c0_i32 = arith.constant 0 : i32
    %c0_i32_0 = arith.constant 0 : i32
    %c0_i32_1 = arith.constant 0 : i32
    return %c0_i32, %c0_i32_0 : i32, i32
  }
  func.func @transform_2(%arg0: i32, %arg1: i32) -> (i32, i32) {
    %c0_i32 = arith.constant 0 : i32
    %c0_i32_0 = arith.constant 0 : i32
    %c0_i32_1 = arith.constant 0 : i32
    return %c0_i32, %c0_i32_0 : i32, i32
  }
  func.func @transform_3(%arg0: i32, %arg1: i32) -> (i32, i32) {
    %c0_i32 = arith.constant 0 : i32
    %c0_i32_0 = arith.constant 0 : i32
    return %c0_i32, %arg1 : i32, i32
  }
  func.func @transform_4(%arg0: i32, %arg1: i32) -> (i32, i32) {
    %c0_i32 = arith.constant 0 : i32
    %c0_i32_0 = arith.constant 0 : i32
    return %c0_i32, %arg1 : i32, i32
  }
  func.func @transform_5(%arg0: i32, %arg1: i32) -> (i32, i32) {
    %c0_i32 = arith.constant 0 : i32
    return %arg0, %arg1 : i32, i32
  }
}

module attributes {stable_mosaic.version = 11 : i64} {
  func.func @_block_kernel(%arg0: i32, %arg1: memref<1x8x32xbf16, #tpu.memory_space<vmem>>, %arg2: memref<1x32xf32, #tpu.memory_space<vmem>>, %arg3: memref<1x32xf32, #tpu.memory_space<vmem>>, %arg4: memref<32x96xbf16, #tpu.memory_space<vmem>>, %arg5: memref<1x96xf32, #tpu.memory_space<vmem>>, %arg6: memref<32x32xbf16, #tpu.memory_space<vmem>>, %arg7: memref<1x32xf32, #tpu.memory_space<vmem>>, %arg8: memref<1x32xf32, #tpu.memory_space<vmem>>, %arg9: memref<1x32xf32, #tpu.memory_space<vmem>>, %arg10: memref<32x128xbf16, #tpu.memory_space<vmem>>, %arg11: memref<1x128xf32, #tpu.memory_space<vmem>>, %arg12: memref<128x32xbf16, #tpu.memory_space<vmem>>, %arg13: memref<1x32xf32, #tpu.memory_space<vmem>>, %arg14: memref<1x8x32xbf16, #tpu.memory_space<vmem>>) attributes {dimension_semantics = [#tpu.dimension_semantics<parallel>], iteration_bounds = array<i64: 2>, scalar_prefetch = 0 : i64, scratch_operands = 0 : i64, tpu.core_type = #tpu.core_type<tc>, window_params = [{transform_indices = @transform_0, window_bounds = array<i64: 1, 8, 32>}, {pipeline_mode = #tpu.pipeline_mode<synchronous>, transform_indices = @transform_1, window_bounds = array<i64: 1, 32>}, {pipeline_mode = #tpu.pipeline_mode<synchronous>, transform_indices = @transform_2, window_bounds = array<i64: 1, 32>}, {pipeline_mode = #tpu.pipeline_mode<synchronous>, transform_indices = @transform_3, window_bounds = array<i64: 32, 96>}, {pipeline_mode = #tpu.pipeline_mode<synchronous>, transform_indices = @transform_4, window_bounds = array<i64: 1, 96>}, {pipeline_mode = #tpu.pipeline_mode<synchronous>, transform_indices = @transform_5, window_bounds = array<i64: 32, 32>}, {pipeline_mode = #tpu.pipeline_mode<synchronous>, transform_indices = @transform_6, window_bounds = array<i64: 1, 32>}, {pipeline_mode = #tpu.pipeline_mode<synchronous>, transform_indices = @transform_7, window_bounds = array<i64: 1, 32>}, {pipeline_mode = #tpu.pipeline_mode<synchronous>, transform_indices = @transform_8, window_bounds = array<i64: 1, 32>}, {pipeline_mode = #tpu.pipeline_mode<synchronous>, transform_indices = @transform_9, window_bounds = array<i64: 32, 128>}, {pipeline_mode = #tpu.pipeline_mode<synchronous>, transform_indices = @transform_10, window_bounds = array<i64: 1, 128>}, {pipeline_mode = #tpu.pipeline_mode<synchronous>, transform_indices = @transform_11, window_bounds = array<i64: 128, 32>}, {pipeline_mode = #tpu.pipeline_mode<synchronous>, transform_indices = @transform_12, window_bounds = array<i64: 1, 32>}, {transform_indices = @transform_13, window_bounds = array<i64: 1, 8, 32>}]} {
    %c0 = arith.constant 0 : index
    %c0_0 = arith.constant 0 : index
    %c0_1 = arith.constant 0 : index
    %0 = vector.load %arg1[%c0, %c0_0, %c0_1] : memref<1x8x32xbf16, #tpu.memory_space<vmem>>, vector<1x8x32xbf16>
    %1 = vector.shape_cast %0 : vector<1x8x32xbf16> to vector<8x32xbf16>
    %2 = arith.extf %1 : vector<8x32xbf16> to vector<8x32xf32>
    %c0_2 = arith.constant 0 : index
    %c0_3 = arith.constant 0 : index
    %3 = vector.load %arg2[%c0_2, %c0_3] : memref<1x32xf32, #tpu.memory_space<vmem>>, vector<1x32xf32>
    %c0_4 = arith.constant 0 : index
    %c0_5 = arith.constant 0 : index
    %4 = vector.load %arg3[%c0_4, %c0_5] : memref<1x32xf32, #tpu.memory_space<vmem>>, vector<1x32xf32>
    %cst = arith.constant dense<0.000000e+00> : vector<8xf32>
    %5 = vector.multi_reduction <add>, %2, %cst [1] : vector<8x32xf32> to vector<8xf32>
    %6 = vector.shape_cast %5 : vector<8xf32> to vector<8x1xf32>
    %cst_6 = arith.constant 3.200000e+01 : f32
    %7 = vector.broadcast %cst_6 : f32 to vector<8x1xf32>
    %8 = arith.divf %6, %7 : vector<8x1xf32>
    %9 = vector.broadcast %8 : vector<8x1xf32> to vector<8x32xf32>
    %10 = arith.subf %2, %9 : vector<8x32xf32>
    %11 = arith.mulf %10, %10 : vector<8x32xf32>
    %cst_7 = arith.constant dense<0.000000e+00> : vector<8xf32>
    %12 = vector.multi_reduction <add>, %11, %cst_7 [1] : vector<8x32xf32> to vector<8xf32>
    %13 = vector.shape_cast %12 : vector<8xf32> to vector<8x1xf32>
    %cst_8 = arith.constant 3.200000e+01 : f32
    %14 = vector.broadcast %cst_8 : f32 to vector<8x1xf32>
    %15 = arith.divf %13, %14 : vector<8x1xf32>
    %16 = vector.broadcast %8 : vector<8x1xf32> to vector<8x32xf32>
    %17 = arith.subf %2, %16 : vector<8x32xf32>
    %cst_9 = arith.constant 9.99999974E-6 : f32
    %18 = vector.broadcast %cst_9 : f32 to vector<8x1xf32>
    %19 = arith.addf %15, %18 : vector<8x1xf32>
    %20 = math.rsqrt %19 : vector<8x1xf32>
    %21 = vector.broadcast %20 : vector<8x1xf32> to vector<8x32xf32>
    %22 = arith.mulf %17, %21 : vector<8x32xf32>
    %23 = vector.broadcast %3 : vector<1x32xf32> to vector<8x32xf32>
    %24 = arith.mulf %22, %23 : vector<8x32xf32>
    %25 = vector.broadcast %4 : vector<1x32xf32> to vector<8x32xf32>
    %26 = arith.addf %24, %25 : vector<8x32xf32>
    %27 = arith.truncf %26 : vector<8x32xf32> to vector<8x32xbf16>
    %c0_10 = arith.constant 0 : index
    %c0_11 = arith.constant 0 : index
    %28 = vector.load %arg4[%c0_10, %c0_11] : memref<32x96xbf16, #tpu.memory_space<vmem>>, vector<32x96xbf16>
    %cst_12 = arith.constant dense<0.000000e+00> : vector<8x96xf32>
    %29 = tpu.matmul %27, %28, %cst_12 {dimension_numbers = #tpu.dot_dimension_numbers<[1], [0], [0], [1], [0, 0, 1, 1], [], []>} : vector<8x32xbf16>, vector<32x96xbf16>, vector<8x96xf32> -> vector<8x96xf32>
    %c0_13 = arith.constant 0 : index
    %c0_14 = arith.constant 0 : index
    %30 = vector.load %arg5[%c0_13, %c0_14] : memref<1x96xf32, #tpu.memory_space<vmem>>, vector<1x96xf32>
    %31 = vector.broadcast %30 : vector<1x96xf32> to vector<8x96xf32>
    %32 = arith.addf %29, %31 : vector<8x96xf32>
    %33 = tpu.iota {dimensions = array<i32: 0>} : vector<8x8xi32>
    %34 = tpu.iota {dimensions = array<i32: 1>} : vector<8x8xi32>
    %35 = arith.cmpi sge, %33, %34 : vector<8x8xi32>
    %36 = vector.extract_strided_slice %32 {offsets = [0, 0], sizes = [8, 8], strides = [1, 1]} : vector<8x96xf32> to vector<8x8xf32>
    %37 = arith.truncf %36 : vector<8x8xf32> to vector<8x8xbf16>
    %38 = vector.extract_strided_slice %32 {offsets = [0, 32], sizes = [8, 8], strides = [1, 1]} : vector<8x96xf32> to vector<8x8xf32>
    %39 = arith.truncf %38 : vector<8x8xf32> to vector<8x8xbf16>
    %40 = vector.extract_strided_slice %32 {offsets = [0, 64], sizes = [8, 8], strides = [1, 1]} : vector<8x96xf32> to vector<8x8xf32>
    %41 = arith.truncf %40 : vector<8x8xf32> to vector<8x8xbf16>
    %42 = tpu.transpose %39, [1, 0] : vector<8x8xbf16> -> vector<8x8xbf16>
    %cst_15 = arith.constant dense<0.000000e+00> : vector<8x8xf32>
    %43 = tpu.matmul %37, %42, %cst_15 {dimension_numbers = #tpu.dot_dimension_numbers<[1], [0], [0], [1], [0, 0, 1, 1], [], []>} : vector<8x8xbf16>, vector<8x8xbf16>, vector<8x8xf32> -> vector<8x8xf32>
    %cst_16 = arith.constant 0.353553385 : f32
    %44 = vector.broadcast %cst_16 : f32 to vector<8x8xf32>
    %45 = arith.mulf %43, %44 : vector<8x8xf32>
    %cst_17 = arith.constant -1.000000e+30 : f32
    %46 = vector.broadcast %cst_17 : f32 to vector<8x8xf32>
    %47 = arith.select %35, %45, %46 : vector<8x8xi1>, vector<8x8xf32>
    %cst_18 = arith.constant dense<0xFF800000> : vector<8xf32>
    %48 = vector.multi_reduction <maximumf>, %47, %cst_18 [1] : vector<8x8xf32> to vector<8xf32>
    %49 = vector.shape_cast %48 : vector<8xf32> to vector<8x1xf32>
    %50 = vector.broadcast %49 : vector<8x1xf32> to vector<8x8xf32>
    %51 = arith.subf %47, %50 : vector<8x8xf32>
    %52 = math.exp %51 : vector<8x8xf32>
    %cst_19 = arith.constant dense<0.000000e+00> : vector<8xf32>
    %53 = vector.multi_reduction <add>, %52, %cst_19 [1] : vector<8x8xf32> to vector<8xf32>
    %54 = vector.shape_cast %53 : vector<8xf32> to vector<8x1xf32>
    %55 = vector.broadcast %54 : vector<8x1xf32> to vector<8x8xf32>
    %56 = arith.divf %52, %55 : vector<8x8xf32>
    %57 = arith.truncf %56 : vector<8x8xf32> to vector<8x8xbf16>
    %cst_20 = arith.constant dense<0.000000e+00> : vector<8x8xf32>
    %58 = tpu.matmul %57, %41, %cst_20 {dimension_numbers = #tpu.dot_dimension_numbers<[1], [0], [0], [1], [0, 0, 1, 1], [], []>} : vector<8x8xbf16>, vector<8x8xbf16>, vector<8x8xf32> -> vector<8x8xf32>
    %59 = vector.extract_strided_slice %32 {offsets = [0, 8], sizes = [8, 8], strides = [1, 1]} : vector<8x96xf32> to vector<8x8xf32>
    %60 = arith.truncf %59 : vector<8x8xf32> to vector<8x8xbf16>
    %61 = vector.extract_strided_slice %32 {offsets = [0, 40], sizes = [8, 8], strides = [1, 1]} : vector<8x96xf32> to vector<8x8xf32>
    %62 = arith.truncf %61 : vector<8x8xf32> to vector<8x8xbf16>
    %63 = vector.extract_strided_slice %32 {offsets = [0, 72], sizes = [8, 8], strides = [1, 1]} : vector<8x96xf32> to vector<8x8xf32>
    %64 = arith.truncf %63 : vector<8x8xf32> to vector<8x8xbf16>
    %65 = tpu.transpose %62, [1, 0] : vector<8x8xbf16> -> vector<8x8xbf16>
    %cst_21 = arith.constant dense<0.000000e+00> : vector<8x8xf32>
    %66 = tpu.matmul %60, %65, %cst_21 {dimension_numbers = #tpu.dot_dimension_numbers<[1], [0], [0], [1], [0, 0, 1, 1], [], []>} : vector<8x8xbf16>, vector<8x8xbf16>, vector<8x8xf32> -> vector<8x8xf32>
    %cst_22 = arith.constant 0.353553385 : f32
    %67 = vector.broadcast %cst_22 : f32 to vector<8x8xf32>
    %68 = arith.mulf %66, %67 : vector<8x8xf32>
    %cst_23 = arith.constant -1.000000e+30 : f32
    %69 = vector.broadcast %cst_23 : f32 to vector<8x8xf32>
    %70 = arith.select %35, %68, %69 : vector<8x8xi1>, vector<8x8xf32>
    %cst_24 = arith.constant dense<0xFF800000> : vector<8xf32>
    %71 = vector.multi_reduction <maximumf>, %70, %cst_24 [1] : vector<8x8xf32> to vector<8xf32>
    %72 = vector.shape_cast %71 : vector<8xf32> to vector<8x1xf32>
    %73 = vector.broadcast %72 : vector<8x1xf32> to vector<8x8xf32>
    %74 = arith.subf %70, %73 : vector<8x8xf32>
    %75 = math.exp %74 : vector<8x8xf32>
    %cst_25 = arith.constant dense<0.000000e+00> : vector<8xf32>
    %76 = vector.multi_reduction <add>, %75, %cst_25 [1] : vector<8x8xf32> to vector<8xf32>
    %77 = vector.shape_cast %76 : vector<8xf32> to vector<8x1xf32>
    %78 = vector.broadcast %77 : vector<8x1xf32> to vector<8x8xf32>
    %79 = arith.divf %75, %78 : vector<8x8xf32>
    %80 = arith.truncf %79 : vector<8x8xf32> to vector<8x8xbf16>
    %cst_26 = arith.constant dense<0.000000e+00> : vector<8x8xf32>
    %81 = tpu.matmul %80, %64, %cst_26 {dimension_numbers = #tpu.dot_dimension_numbers<[1], [0], [0], [1], [0, 0, 1, 1], [], []>} : vector<8x8xbf16>, vector<8x8xbf16>, vector<8x8xf32> -> vector<8x8xf32>
    %82 = vector.extract_strided_slice %32 {offsets = [0, 16], sizes = [8, 8], strides = [1, 1]} : vector<8x96xf32> to vector<8x8xf32>
    %83 = arith.truncf %82 : vector<8x8xf32> to vector<8x8xbf16>
    %84 = vector.extract_strided_slice %32 {offsets = [0, 48], sizes = [8, 8], strides = [1, 1]} : vector<8x96xf32> to vector<8x8xf32>
    %85 = arith.truncf %84 : vector<8x8xf32> to vector<8x8xbf16>
    %86 = vector.extract_strided_slice %32 {offsets = [0, 80], sizes = [8, 8], strides = [1, 1]} : vector<8x96xf32> to vector<8x8xf32>
    %87 = arith.truncf %86 : vector<8x8xf32> to vector<8x8xbf16>
    %88 = tpu.transpose %85, [1, 0] : vector<8x8xbf16> -> vector<8x8xbf16>
    %cst_27 = arith.constant dense<0.000000e+00> : vector<8x8xf32>
    %89 = tpu.matmul %83, %88, %cst_27 {dimension_numbers = #tpu.dot_dimension_numbers<[1], [0], [0], [1], [0, 0, 1, 1], [], []>} : vector<8x8xbf16>, vector<8x8xbf16>, vector<8x8xf32> -> vector<8x8xf32>
    %cst_28 = arith.constant 0.353553385 : f32
    %90 = vector.broadcast %cst_28 : f32 to vector<8x8xf32>
    %91 = arith.mulf %89, %90 : vector<8x8xf32>
    %cst_29 = arith.constant -1.000000e+30 : f32
    %92 = vector.broadcast %cst_29 : f32 to vector<8x8xf32>
    %93 = arith.select %35, %91, %92 : vector<8x8xi1>, vector<8x8xf32>
    %cst_30 = arith.constant dense<0xFF800000> : vector<8xf32>
    %94 = vector.multi_reduction <maximumf>, %93, %cst_30 [1] : vector<8x8xf32> to vector<8xf32>
    %95 = vector.shape_cast %94 : vector<8xf32> to vector<8x1xf32>
    %96 = vector.broadcast %95 : vector<8x1xf32> to vector<8x8xf32>
    %97 = arith.subf %93, %96 : vector<8x8xf32>
    %98 = math.exp %97 : vector<8x8xf32>
    %cst_31 = arith.constant dense<0.000000e+00> : vector<8xf32>
    %99 = vector.multi_reduction <add>, %98, %cst_31 [1] : vector<8x8xf32> to vector<8xf32>
    %100 = vector.shape_cast %99 : vector<8xf32> to vector<8x1xf32>
    %101 = vector.broadcast %100 : vector<8x1xf32> to vector<8x8xf32>
    %102 = arith.divf %98, %101 : vector<8x8xf32>
    %103 = arith.truncf %102 : vector<8x8xf32> to vector<8x8xbf16>
    %cst_32 = arith.constant dense<0.000000e+00> : vector<8x8xf32>
    %104 = tpu.matmul %103, %87, %cst_32 {dimension_numbers = #tpu.dot_dimension_numbers<[1], [0], [0], [1], [0, 0, 1, 1], [], []>} : vector<8x8xbf16>, vector<8x8xbf16>, vector<8x8xf32> -> vector<8x8xf32>
    %105 = vector.extract_strided_slice %32 {offsets = [0, 24], sizes = [8, 8], strides = [1, 1]} : vector<8x96xf32> to vector<8x8xf32>
    %106 = arith.truncf %105 : vector<8x8xf32> to vector<8x8xbf16>
    %107 = vector.extract_strided_slice %32 {offsets = [0, 56], sizes = [8, 8], strides = [1, 1]} : vector<8x96xf32> to vector<8x8xf32>
    %108 = arith.truncf %107 : vector<8x8xf32> to vector<8x8xbf16>
    %109 = vector.extract_strided_slice %32 {offsets = [0, 88], sizes = [8, 8], strides = [1, 1]} : vector<8x96xf32> to vector<8x8xf32>
    %110 = arith.truncf %109 : vector<8x8xf32> to vector<8x8xbf16>
    %111 = tpu.transpose %108, [1, 0] : vector<8x8xbf16> -> vector<8x8xbf16>
    %cst_33 = arith.constant dense<0.000000e+00> : vector<8x8xf32>
    %112 = tpu.matmul %106, %111, %cst_33 {dimension_numbers = #tpu.dot_dimension_numbers<[1], [0], [0], [1], [0, 0, 1, 1], [], []>} : vector<8x8xbf16>, vector<8x8xbf16>, vector<8x8xf32> -> vector<8x8xf32>
    %cst_34 = arith.constant 0.353553385 : f32
    %113 = vector.broadcast %cst_34 : f32 to vector<8x8xf32>
    %114 = arith.mulf %112, %113 : vector<8x8xf32>
    %cst_35 = arith.constant -1.000000e+30 : f32
    %115 = vector.broadcast %cst_35 : f32 to vector<8x8xf32>
    %116 = arith.select %35, %114, %115 : vector<8x8xi1>, vector<8x8xf32>
    %cst_36 = arith.constant dense<0xFF800000> : vector<8xf32>
    %117 = vector.multi_reduction <maximumf>, %116, %cst_36 [1] : vector<8x8xf32> to vector<8xf32>
    %118 = vector.shape_cast %117 : vector<8xf32> to vector<8x1xf32>
    %119 = vector.broadcast %118 : vector<8x1xf32> to vector<8x8xf32>
    %120 = arith.subf %116, %119 : vector<8x8xf32>
    %121 = math.exp %120 : vector<8x8xf32>
    %cst_37 = arith.constant dense<0.000000e+00> : vector<8xf32>
    %122 = vector.multi_reduction <add>, %121, %cst_37 [1] : vector<8x8xf32> to vector<8xf32>
    %123 = vector.shape_cast %122 : vector<8xf32> to vector<8x1xf32>
    %124 = vector.broadcast %123 : vector<8x1xf32> to vector<8x8xf32>
    %125 = arith.divf %121, %124 : vector<8x8xf32>
    %126 = arith.truncf %125 : vector<8x8xf32> to vector<8x8xbf16>
    %cst_38 = arith.constant dense<0.000000e+00> : vector<8x8xf32>
    %127 = tpu.matmul %126, %110, %cst_38 {dimension_numbers = #tpu.dot_dimension_numbers<[1], [0], [0], [1], [0, 0, 1, 1], [], []>} : vector<8x8xbf16>, vector<8x8xbf16>, vector<8x8xf32> -> vector<8x8xf32>
    %128 = tpu.concatenate %58, %81, %104, %127 in 1 : vector<8x8xf32>, vector<8x8xf32>, vector<8x8xf32>, vector<8x8xf32> -> vector<8x32xf32>
    %c0_39 = arith.constant 0 : index
    %c0_40 = arith.constant 0 : index
    %129 = vector.load %arg7[%c0_39, %c0_40] : memref<1x32xf32, #tpu.memory_space<vmem>>, vector<1x32xf32>
    %130 = vector.broadcast %129 : vector<1x32xf32> to vector<8x32xf32>
    %131 = arith.addf %2, %130 : vector<8x32xf32>
    %132 = arith.truncf %128 : vector<8x32xf32> to vector<8x32xbf16>
    %c0_41 = arith.constant 0 : index
    %c0_42 = arith.constant 0 : index
    %133 = vector.load %arg6[%c0_41, %c0_42] : memref<32x32xbf16, #tpu.memory_space<vmem>>, vector<32x32xbf16>
    %cst_43 = arith.constant dense<0.000000e+00> : vector<8x32xf32>
    %134 = tpu.matmul %132, %133, %cst_43 {dimension_numbers = #tpu.dot_dimension_numbers<[1], [0], [0], [1], [0, 0, 1, 1], [], []>} : vector<8x32xbf16>, vector<32x32xbf16>, vector<8x32xf32> -> vector<8x32xf32>
    %135 = arith.addf %131, %134 : vector<8x32xf32>
    %c0_44 = arith.constant 0 : index
    %c0_45 = arith.constant 0 : index
    %136 = vector.load %arg8[%c0_44, %c0_45] : memref<1x32xf32, #tpu.memory_space<vmem>>, vector<1x32xf32>
    %c0_46 = arith.constant 0 : index
    %c0_47 = arith.constant 0 : index
    %137 = vector.load %arg9[%c0_46, %c0_47] : memref<1x32xf32, #tpu.memory_space<vmem>>, vector<1x32xf32>
    %cst_48 = arith.constant dense<0.000000e+00> : vector<8xf32>
    %138 = vector.multi_reduction <add>, %135, %cst_48 [1] : vector<8x32xf32> to vector<8xf32>
    %139 = vector.shape_cast %138 : vector<8xf32> to vector<8x1xf32>
    %cst_49 = arith.constant 3.200000e+01 : f32
    %140 = vector.broadcast %cst_49 : f32 to vector<8x1xf32>
    %141 = arith.divf %139, %140 : vector<8x1xf32>
    %142 = vector.broadcast %141 : vector<8x1xf32> to vector<8x32xf32>
    %143 = arith.subf %135, %142 : vector<8x32xf32>
    %144 = arith.mulf %143, %143 : vector<8x32xf32>
    %cst_50 = arith.constant dense<0.000000e+00> : vector<8xf32>
    %145 = vector.multi_reduction <add>, %144, %cst_50 [1] : vector<8x32xf32> to vector<8xf32>
    %146 = vector.shape_cast %145 : vector<8xf32> to vector<8x1xf32>
    %cst_51 = arith.constant 3.200000e+01 : f32
    %147 = vector.broadcast %cst_51 : f32 to vector<8x1xf32>
    %148 = arith.divf %146, %147 : vector<8x1xf32>
    %149 = vector.broadcast %141 : vector<8x1xf32> to vector<8x32xf32>
    %150 = arith.subf %135, %149 : vector<8x32xf32>
    %cst_52 = arith.constant 9.99999974E-6 : f32
    %151 = vector.broadcast %cst_52 : f32 to vector<8x1xf32>
    %152 = arith.addf %148, %151 : vector<8x1xf32>
    %153 = math.rsqrt %152 : vector<8x1xf32>
    %154 = vector.broadcast %153 : vector<8x1xf32> to vector<8x32xf32>
    %155 = arith.mulf %150, %154 : vector<8x32xf32>
    %156 = vector.broadcast %136 : vector<1x32xf32> to vector<8x32xf32>
    %157 = arith.mulf %155, %156 : vector<8x32xf32>
    %158 = vector.broadcast %137 : vector<1x32xf32> to vector<8x32xf32>
    %159 = arith.addf %157, %158 : vector<8x32xf32>
    %160 = arith.truncf %159 : vector<8x32xf32> to vector<8x32xbf16>
    %c0_53 = arith.constant 0 : index
    %c0_54 = arith.constant 0 : index
    %161 = vector.load %arg10[%c0_53, %c0_54] : memref<32x128xbf16, #tpu.memory_space<vmem>>, vector<32x128xbf16>
    %cst_55 = arith.constant dense<0.000000e+00> : vector<8x128xf32>
    %162 = tpu.matmul %160, %161, %cst_55 {dimension_numbers = #tpu.dot_dimension_numbers<[1], [0], [0], [1], [0, 0, 1, 1], [], []>} : vector<8x32xbf16>, vector<32x128xbf16>, vector<8x128xf32> -> vector<8x128xf32>
    %c0_56 = arith.constant 0 : index
    %c0_57 = arith.constant 0 : index
    %163 = vector.load %arg11[%c0_56, %c0_57] : memref<1x128xf32, #tpu.memory_space<vmem>>, vector<1x128xf32>
    %164 = vector.broadcast %163 : vector<1x128xf32> to vector<8x128xf32>
    %165 = arith.addf %162, %164 : vector<8x128xf32>
    %166 = arith.mulf %165, %165 : vector<8x128xf32>
    %167 = arith.mulf %165, %166 : vector<8x128xf32>
    %cst_58 = arith.constant 4.471500e-02 : f32
    %168 = vector.broadcast %cst_58 : f32 to vector<8x128xf32>
    %169 = arith.mulf %168, %167 : vector<8x128xf32>
    %170 = arith.addf %165, %169 : vector<8x128xf32>
    %cst_59 = arith.constant 0.797884583 : f32
    %171 = vector.broadcast %cst_59 : f32 to vector<8x128xf32>
    %172 = arith.mulf %171, %170 : vector<8x128xf32>
    %173 = math.tanh %172 : vector<8x128xf32>
    %cst_60 = arith.constant 1.000000e+00 : f32
    %174 = vector.broadcast %cst_60 : f32 to vector<8x128xf32>
    %175 = arith.addf %174, %173 : vector<8x128xf32>
    %cst_61 = arith.constant 5.000000e-01 : f32
    %176 = vector.broadcast %cst_61 : f32 to vector<8x128xf32>
    %177 = arith.mulf %176, %175 : vector<8x128xf32>
    %178 = arith.mulf %165, %177 : vector<8x128xf32>
    %c0_62 = arith.constant 0 : index
    %c0_63 = arith.constant 0 : index
    %179 = vector.load %arg13[%c0_62, %c0_63] : memref<1x32xf32, #tpu.memory_space<vmem>>, vector<1x32xf32>
    %180 = vector.broadcast %179 : vector<1x32xf32> to vector<8x32xf32>
    %181 = arith.addf %135, %180 : vector<8x32xf32>
    %182 = arith.truncf %178 : vector<8x128xf32> to vector<8x128xbf16>
    %c0_64 = arith.constant 0 : index
    %c0_65 = arith.constant 0 : index
    %183 = vector.load %arg12[%c0_64, %c0_65] : memref<128x32xbf16, #tpu.memory_space<vmem>>, vector<128x32xbf16>
    %cst_66 = arith.constant dense<0.000000e+00> : vector<8x32xf32>
    %184 = tpu.matmul %182, %183, %cst_66 {dimension_numbers = #tpu.dot_dimension_numbers<[1], [0], [0], [1], [0, 0, 1, 1], [], []>} : vector<8x128xbf16>, vector<128x32xbf16>, vector<8x32xf32> -> vector<8x32xf32>
    %185 = arith.addf %181, %184 : vector<8x32xf32>
    %186 = arith.truncf %185 : vector<8x32xf32> to vector<8x32xbf16>
    %c0_67 = arith.constant 0 : index
    %c0_68 = arith.constant 0 : index
    %c0_69 = arith.constant 0 : index
    %187 = vector.load %arg14[%c0_67, %c0_68, %c0_69] : memref<1x8x32xbf16, #tpu.memory_space<vmem>>, vector<1x8x32xbf16>
    %188 = vector.shape_cast %187 : vector<1x8x32xbf16> to vector<8x32xbf16>
    %189 = vector.shape_cast %186 : vector<8x32xbf16> to vector<1x8x32xbf16>
    tpu.vector_store %arg14[%c0_67, %c0_68, %c0_69], %189 {strides = array<i32>} : memref<1x8x32xbf16, #tpu.memory_space<vmem>>, vector<1x8x32xbf16>,
    return
  }
  func.func @transform_0(%arg0: i32) -> (i32, i32, i32) {
    %c0_i32 = arith.constant 0 : i32
    %c0_i32_0 = arith.constant 0 : i32
    %c0_i32_1 = arith.constant 0 : i32
    return %arg0, %c0_i32, %c0_i32_0 : i32, i32, i32
  }
  func.func @transform_1(%arg0: i32) -> (i32, i32) {
    %c0_i32 = arith.constant 0 : i32
    %c0_i32_0 = arith.constant 0 : i32
    %c0_i32_1 = arith.constant 0 : i32
    return %c0_i32, %c0_i32_0 : i32, i32
  }
  func.func @transform_2(%arg0: i32) -> (i32, i32) {
    %c0_i32 = arith.constant 0 : i32
    %c0_i32_0 = arith.constant 0 : i32
    %c0_i32_1 = arith.constant 0 : i32
    return %c0_i32, %c0_i32_0 : i32, i32
  }
  func.func @transform_3(%arg0: i32) -> (i32, i32) {
    %c0_i32 = arith.constant 0 : i32
    %c0_i32_0 = arith.constant 0 : i32
    %c0_i32_1 = arith.constant 0 : i32
    return %c0_i32, %c0_i32_0 : i32, i32
  }
  func.func @transform_4(%arg0: i32) -> (i32, i32) {
    %c0_i32 = arith.constant 0 : i32
    %c0_i32_0 = arith.constant 0 : i32
    %c0_i32_1 = arith.constant 0 : i32
    return %c0_i32, %c0_i32_0 : i32, i32
  }
  func.func @transform_5(%arg0: i32) -> (i32, i32) {
    %c0_i32 = arith.constant 0 : i32
    %c0_i32_0 = arith.constant 0 : i32
    %c0_i32_1 = arith.constant 0 : i32
    return %c0_i32, %c0_i32_0 : i32, i32
  }
  func.func @transform_6(%arg0: i32) -> (i32, i32) {
    %c0_i32 = arith.constant 0 : i32
    %c0_i32_0 = arith.constant 0 : i32
    %c0_i32_1 = arith.constant 0 : i32
    return %c0_i32, %c0_i32_0 : i32, i32
  }
  func.func @transform_7(%arg0: i32) -> (i32, i32) {
    %c0_i32 = arith.constant 0 : i32
    %c0_i32_0 = arith.constant 0 : i32
    %c0_i32_1 = arith.constant 0 : i32
    return %c0_i32, %c0_i32_0 : i32, i32
  }
  func.func @transform_8(%arg0: i32) -> (i32, i32) {
    %c0_i32 = arith.constant 0 : i32
    %c0_i32_0 = arith.constant 0 : i32
    %c0_i32_1 = arith.constant 0 : i32
    return %c0_i32, %c0_i32_0 : i32, i32
  }
  func.func @transform_9(%arg0: i32) -> (i32, i32) {
    %c0_i32 = arith.constant 0 : i32
    %c0_i32_0 = arith.constant 0 : i32
    %c0_i32_1 = arith.constant 0 : i32
    return %c0_i32, %c0_i32_0 : i32, i32
  }
  func.func @transform_10(%arg0: i32) -> (i32, i32) {
    %c0_i32 = arith.constant 0 : i32
    %c0_i32_0 = arith.constant 0 : i32
    %c0_i32_1 = arith.constant 0 : i32
    return %c0_i32, %c0_i32_0 : i32, i32
  }
  func.func @transform_11(%arg0: i32) -> (i32, i32) {
    %c0_i32 = arith.constant 0 : i32
    %c0_i32_0 = arith.constant 0 : i32
    %c0_i32_1 = arith.constant 0 : i32
    return %c0_i32, %c0_i32_0 : i32, i32
  }
  func.func @transform_12(%arg0: i32) -> (i32, i32) {
    %c0_i32 = arith.constant 0 : i32
    %c0_i32_0 = arith.constant 0 : i32
    %c0_i32_1 = arith.constant 0 : i32
    return %c0_i32, %c0_i32_0 : i32, i32
  }
  func.func @transform_13(%arg0: i32) -> (i32, i32, i32) {
    %c0_i32 = arith.constant 0 : i32
    %c0_i32_0 = arith.constant 0 : i32
    %c0_i32_1 = arith.constant 0 : i32
    return %arg0, %c0_i32, %c0_i32_0 : i32, i32, i32
  }
}

</mosaic_0001>

<llo_original>
// kernel: forward_batch.5
$region0: #{forward_batch.5}
  #allocation0 [shape = 'u32[]', space=smem, size = 0x4, offset = 0x4, fixed_abs, tag = 'smem constant byte address 0x4 - core index']
  #allocation1 [shape = 'u32[144,128]{1,0:T(1,128)}', space=vmem, size = 0x12000, scoped, tag = 'internal scratch']
  #allocation2 [shape = 'bf16[16,32]{1,0:T(8,128)(2,1)}', space=vmem, size = 0x1000, scoped, tag = 'scratch operand']
  %s0 = inlined_call_operand.vmem [shape: bf16[16,32], index: 0, kind: input, shape index: {}]
  %s1 = inlined_call_operand.vmem [shape: f32[1,32], index: 1, kind: input, shape index: {}]
  %s2 = inlined_call_operand.vmem [shape: f32[1,32], index: 2, kind: input, shape index: {}]
  %s3 = inlined_call_operand.vmem [shape: bf16[32,64], index: 3, kind: input, shape index: {}]
  %s4 = inlined_call_operand.vmem [shape: f32[1,64], index: 4, kind: input, shape index: {}]
  %s5 = inlined_call_operand.hbm [shape: f32[16,64], index: 5, kind: output, shape index: {}]
  %s6 = sld [smem:[#allocation0]]
  $region34: #{forward_batch.5} parent=0
    _
  %s8 = ssub.s32 1, %s6
  %s9 = scalar_select 0, %s8, %s6
  $region1: #{forward_batch.5} parent=0
    #allocation3 [shape = 'u8[8192]{0}', space=vmem, size = 0x2000, scoped, tag = 'output window, operand 0, single buffered']
    #allocation4 [shape = 's32[1]{0}', space=sflag, size = 0x4, scoped, tag = 'scoped memory for forward_batch.5']
    %10 = vsyncpa [#allocation4], 0
    // Predicated region
    $region2: #{forward_batch.5} parent=1 // pred_check
      _
    $region3: #{forward_batch.5} parent=1 // pred_check_branch
      %12 = sbr.rel (0) target = $region5
    $region4: #{forward_batch.5} parent=1 // pred_region
      _
    $region5: #{forward_batch.5} parent=1 // pred_fallthru
      _
    // Predicated region
    $region6: #{forward_batch.5} parent=1 // pred_check
      _
    $region7: #{forward_batch.5} parent=1 // pred_check_branch
      %14 = sbr.rel (0) target = $region9
    $region8: #{forward_batch.5} parent=1 // pred_region
      _
    $region9: #{forward_batch.5} parent=1 // pred_fallthru
      _
    // Predicated region
    $region10: #{forward_batch.5} parent=1 // pred_check
      _
    $region11: #{forward_batch.5} parent=1 // pred_check_branch
      %16 = sbr.rel (0) target = $region13
    $region12: #{forward_batch.5} parent=1 // pred_region
      _
    $region13: #{forward_batch.5} parent=1 // pred_fallthru
      _
    // Predicated region
    $region14: #{forward_batch.5} parent=1 // pred_check
      _
    $region15: #{forward_batch.5} parent=1 // pred_check_branch
      %18 = sbr.rel (0) target = $region17
    $region16: #{forward_batch.5} parent=1 // pred_region
      _
    $region17: #{forward_batch.5} parent=1 // pred_fallthru
      _
    // Predicated region
    $region18: #{forward_batch.5} parent=1 // pred_check
      _
    $region19: #{forward_batch.5} parent=1 // pred_check_branch
      %20 = sbr.rel (0) target = $region21
    $region20: #{forward_batch.5} parent=1 // pred_region
      _
    $region21: #{forward_batch.5} parent=1 // pred_fallthru
      _
    %p22 = scmp.eq.s32.totalorder 0, 0
    // Predicated region
    $region22: #{forward_batch.5} parent=1 // pred_check
      %p23 = pneg %p22
    $region23: #{forward_batch.5} parent=1 // pred_check_branch
      %25 = sbr.rel (%p23) target = $region25
    $region24: #{forward_batch.5} parent=1 // pred_region
      %v26 = vld [vmem:[%s0] sm:$0xf]
      %v27 = vld [vmem:[%s0 + $0x4] sm:$0xf]
      %v28 = vld [vmem:[%s1] sm:$0x1]
      %v29 = vld [vmem:[%s2] sm:$0x1]
      %v30 = vunpack.c.l.bf16 %v26
      %v31 = vunpack.c.l.bf16 %v27
      %vm32 = vcmask 261120
      %v33 = vsel %vm32, %v30, 0.0
      %34 = vadd.xlane.f32.xlu0 %v33
      %v35 = vpop.xlane.xlu0 %34
      %v36 = vsel %vm32, %v31, 0.0
      %37 = vadd.xlane.f32.xlu0 %v36
      %v38 = vpop.xlane.xlu0 %37
      %v39 = vrcp.pop 32.0
      %v40 = vmul.f32 %v35, %v39
      %v41 = vmul.f32 %v38, %v39
      %v42 = vsub.f32 %v30, %v40
      %v43 = vsub.f32 %v31, %v41
      %v44 = vmul.f32 %v42, %v42
      %v45 = vmul.f32 %v43, %v43
      %v46 = vsel %vm32, %v44, 0.0
      %47 = vadd.xlane.f32.xlu0 %v46
      %v48 = vpop.xlane.xlu0 %47
      %v49 = vsel %vm32, %v45, 0.0
      %50 = vadd.xlane.f32.xlu0 %v49
      %v51 = vpop.xlane.xlu0 %50
      %v52 = vmul.f32 %v48, %v39
      %v53 = vmul.f32 %v51, %v39
      %v54 = vadd.f32 %v52, 1e-05
      %v55 = vadd.f32 %v53, 1e-05
      %v56 = vrsqrt.pop %v54
      %v57 = vrsqrt.pop %v55
      %v58 = vmul.f32 %v42, %v56
      %v59 = vmul.f32 %v43, %v57
      %v61 = vlaneseq
      %v62 = vshrl.u32 %v61, 7
      %v63 = vsub.s32 0, %v62
      %v64 = vrot.slane %v28, %v63
      %v66 = vmul.f32 %v58, %v64
      %v67 = vmul.f32 %v59, %v64
      %v69 = vlaneseq
      %v70 = vshrl.u32 %v69, 7
      %v71 = vsub.s32 0, %v70
      %v72 = vrot.slane %v29, %v71
      %v74 = vadd.f32 %v66, %v72
      %v75 = vadd.f32 %v67, %v72
      %v76 = vpack.c.bf16 %v75, %v74
      %v78 = vunpack.c.l.b16 %v76
      %v79 = vunpack.c.h.b16 %v76
      %v80 = vpack.c.b16 %v78, %v78
      %v81 = vpack.c.b16 %v79, %v79
      %vm84 = vcmask 257024
      %85 = vst.msk [vmem:[#allocation2] sm:$0xf] %vm84, %v80
      %86 = vst.msk [vmem:[#allocation2 + $0x4] sm:$0xf] %vm84, %v81
    $region25: #{forward_batch.5} parent=1 // pred_fallthru
      _
    %v87 = vld [vmem:[#allocation2] sm:$0xf]
    %v88 = vld [vmem:[#allocation2 + $0x4] sm:$0xf]
    %v89 = vld [vmem:[%s3] sm:$0xf]
    %v90 = vld [vmem:[%s3 + $0x4] sm:$0xf]
    %v91 = vld [vmem:[%s3 + $0x8] sm:$0xf]
    %v92 = vld [vmem:[%s3 + $0xc] sm:$0xf]
    %v93 = vld [vmem:[%s4] sm:$0x1]
    %v95 = vlaneseq
    %v96 = vshrl.u32 %v95, 7
    %v97 = vsub.s32 0, %v96
    %v98 = vrot.slane %v93, %v97
    %v102 = vunpack.c.l.b16 %v87
    %v103 = vunpack.c.l.b16 %v88
    %v104 = vpack.c.b16 %v103, %v102
    %v109 = vunpack.c.l.b16 %v89
    %v110 = vunpack.c.l.b16 %v90
    %v111 = vunpack.c.l.b16 %v91
    %v112 = vunpack.c.l.b16 %v92
    %v113 = vpack.c.b16 %v110, %v109
    %v114 = vpack.c.b16 %v112, %v111
    %vm117 = vcmask 261120
    %v119 = vsel %vm117, %v104, 0
    %121 = vmatprep.subr.bf16.mxu0 0
    %122 = vmatpush1.bf16.msra.mxu0 0
    %123 = vmatprep.subr.bf16.mxu0 0
    %124 = vmatpush1.bf16.msra.mxu0 0
    %125 = vmatprep.subr.bf16.mxu0 0
    %126 = vmatpush1.bf16.msra.mxu0 0
    %127 = vmatprep.subr.bf16.mxu0 0
    %128 = vmatpush1.bf16.msra.mxu0 0
    %129 = vmatprep.subr.bf16.mxu0 0
    %130 = vmatpush1.bf16.msra.mxu0 0
    %131 = vmatprep.subr.bf16.mxu0 0
    %132 = vmatpush1.bf16.msra.mxu0 0
    %133 = vmatprep.subr.bf16.mxu0 0
    %134 = vmatpush1.bf16.msra.mxu0 %v114
    %135 = vmatprep.subr.bf16.mxu0 0
    %136 = vmatpush1.bf16.msra.mxu0 %v113
    %137 = vmatprep.subr.bf16.mxu0 0
    %138 = vmatpush2.bf16.msra.mxu0 0
    %139 = vmatprep.subr.bf16.mxu0 0
    %140 = vmatpush2.bf16.msra.mxu0 0
    %141 = vmatprep.subr.bf16.mxu0 0
    %142 = vmatpush2.bf16.msra.mxu0 0
    %143 = vmatprep.subr.bf16.mxu0 0
    %144 = vmatpush2.bf16.msra.mxu0 0
    %145 = vmatprep.subr.bf16.mxu0 0
    %146 = vmatpush2.bf16.msra.mxu0 0
    %147 = vmatprep.subr.bf16.mxu0 0
    %148 = vmatpush2.bf16.msra.mxu0 0
    %149 = vmatprep.subr.bf16.mxu0 0
    %150 = vmatpush2.bf16.msra.mxu0 0
    %151 = vmatprep.subr.bf16.mxu0 0
    %152 = vmatpush2.bf16.msra.mxu0 0
    %153 = vmatprep.mubr.bf16.mxu0 0
    %154 = vmatmul.mubr.bf16.gmra.mxu0 %v119
    %v155 = vpop.f32.mrf.mxu0
    %v156 = vadd.f32 %v98, %v155
    %v157 = vpop.f32.mrf.mxu0
    %v158 = vpop.f32.mrf.mxu0
    %v159 = vadd.f32 %v98, %v158
    %v160 = vpop.f32.mrf.mxu0
    %161 = vdwg.mxu0
    %vm162 = vcmask 523264
    %163 = vst.msk [vmem:[#allocation3] sm:$0xff] %vm162, %v156
    %164 = vst.msk [vmem:[#allocation3 + $0x8] sm:$0xff] %vm162, %v159
    // Predicated region
    $region26: #{forward_batch.5} parent=1 // pred_check
      _
    $region27: #{forward_batch.5} parent=1 // pred_check_branch
      %166 = sbr.rel (0) target = $region29
    $region28: #{forward_batch.5} parent=1 // pred_region
      %s168 = ssub.s32 256, 256
      %169 = vsyncadd [#allocation4], %s168
      %s170 = sshll.u32 [#allocation3], 4
      %s171 = int_to_ptr.vmem [resolvable:$true] %s170
      %176 = dma.vmem_to_hbm [thread:$0]  %s171, 256, %s5, [#allocation4], 128, 128, 8
    $region29: #{forward_batch.5} parent=1 // pred_fallthru
      _
    // Predicated region
    $region30: #{forward_batch.5} parent=1 // pred_check
      _
    $region31: #{forward_batch.5} parent=1 // pred_check_branch
      %178 = sbr.rel (0) target = $region33
    $region32: #{forward_batch.5} parent=1 // pred_region
      %179 = dma.done [#allocation4], 256
    $region33: #{forward_batch.5} parent=1 // pred_fallthru
      _
    %180 = vsyncpa [#allocation4], 1

// kernel: forward_batch.3
$region0: #{forward_batch.3}
  #allocation0 [shape = 'u32[]', space=smem, size = 0x4, offset = 0x4, fixed_abs, tag = 'smem constant byte address 0x4 - core index']
  #allocation1 [shape = 'u32[144,128]{1,0:T(1,128)}', space=vmem, size = 0x12000, scoped, tag = 'internal scratch']
  %s0 = inlined_call_operand.vmem [shape: bf16[2,8,32], index: 0, kind: input, shape index: {}]
  %s1 = inlined_call_operand.vmem [shape: f32[1,32], index: 1, kind: input, shape index: {}]
  %s2 = inlined_call_operand.vmem [shape: f32[1,32], index: 2, kind: input, shape index: {}]
  %s3 = inlined_call_operand.vmem [shape: bf16[32,96], index: 3, kind: input, shape index: {}]
  %s4 = inlined_call_operand.vmem [shape: f32[1,96], index: 4, kind: input, shape index: {}]
  %s5 = inlined_call_operand.vmem [shape: bf16[32,32], index: 5, kind: input, shape index: {}]
  %s6 = inlined_call_operand.vmem [shape: f32[1,32], index: 6, kind: input, shape index: {}]
  %s7 = inlined_call_operand.vmem [shape: f32[1,32], index: 7, kind: input, shape index: {}]
  %s8 = inlined_call_operand.vmem [shape: f32[1,32], index: 8, kind: input, shape index: {}]
  %s9 = inlined_call_operand.vmem [shape: bf16[32,128], index: 9, kind: input, shape index: {}]
  %s10 = inlined_call_operand.vmem [shape: f32[1,128], index: 10, kind: input, shape index: {}]
  %s11 = inlined_call_operand.vmem [shape: bf16[128,32], index: 11, kind: input, shape index: {}]
  %s12 = inlined_call_operand.vmem [shape: f32[1,32], index: 12, kind: input, shape index: {}]
  %s13 = inlined_call_operand.vmem [shape: bf16[2,8,32], index: 13, kind: output, shape index: {}]
  %s14 = sld [smem:[#allocation0]]
  $region85: #{forward_batch.3} parent=0
    _
  %s16 = ssub.s32 1, %s14
  %s17 = scalar_select 0, %s16, %s14
  loop: start=0, step=1, limit=4
  $region2: #{forward_batch.3} parent=0 // loop_pre_header
    _
  $region3: #{forward_batch.3} parent=0 // loop_header
    %s19 = sphi 0, %s23
    %p20 = scmp.ge.s32.totalorder %s19, 4
    %s29 = sphi 0, %s31
    %s32 = sphi 0, %s29
    %s33 = sphi 0, %s32
    %s49 = sphi 0, %s33
    %s53 = sphi 0, %s53
    %s55 = sphi 0, %s53
    %s56 = sphi 0, %s55
    %s70 = sphi 0, %s56
    %s74 = sphi 0, %s74
    %s76 = sphi 0, %s74
    %s77 = sphi 0, %s76
    %s91 = sphi 0, %s77
    %s95 = sphi 0, %s95
    %s97 = sphi 0, %s95
    %s98 = sphi 0, %s97
    %s112 = sphi 0, %s98
    %s116 = sphi 0, %s116
    %s118 = sphi 0, %s116
    %s119 = sphi 0, %s118
    %s133 = sphi 0, %s119
    %s137 = sphi 0, %s137
    %s139 = sphi 0, %s137
    %s140 = sphi 0, %s139
    %s154 = sphi 0, %s140
    %s158 = sphi 0, %s158
    %s160 = sphi 0, %s158
    %s161 = sphi 0, %s160
    %s175 = sphi 0, %s161
    %s179 = sphi 0, %s179
    %s181 = sphi 0, %s179
    %s182 = sphi 0, %s181
    %s196 = sphi 0, %s182
    %s200 = sphi 0, %s200
    %s202 = sphi 0, %s200
    %s203 = sphi 0, %s202
    %s217 = sphi 0, %s203
    %s221 = sphi 0, %s221
    %s223 = sphi 0, %s221
    %s224 = sphi 0, %s223
    %s238 = sphi 0, %s224
    %s242 = sphi 0, %s242
    %s244 = sphi 0, %s242
    %s245 = sphi 0, %s244
    %s259 = sphi 0, %s245
    %s263 = sphi 0, %s263
    %s265 = sphi 0, %s263
    %s266 = sphi 0, %s265
    %s280 = sphi 0, %s266
    %s284 = sphi 0, %s284
    %s286 = sphi 0, %s284
    %s287 = sphi 0, %s286
    %s301 = sphi 0, %s287
    %s307 = sphi 0, %s309
    %s310 = sphi 0, %s307
    %s311 = sphi 0, %s310
    %s327 = sphi 0, %s311
  $region4: #{forward_batch.3} parent=0 // loop_header_branch
    %22 = sbr.rel (%p20) target = $region8
  $region5: #{forward_batch.3} parent=0 // loop_body
    %s24 = ssub.s32 %s19, 1
    %s25 = ssub.s32 %s19, 2
    %s26 = sadd.s32 %s19, 1
    %s27 = ssub.s32 %s19, %s26
    %p28 = scmp.eq.s32.totalorder %s27, 0
    %s30 = sadd.s32 %s29, 1
    %s31 = scalar_select %p28, %s29, %s30
    %p34 = pneg %p28
    %p35 = scmp.eq.s32.totalorder %s19, 1
    %p36 = por %p34, %p35
    %p37 = scmp.ne.s32.totalorder %s29, %s32
    %p38 = scmp.eq.s32.totalorder %s19, 0
    %p39 = por %p37, %p38
    %p40 = scmp.ne.s32.totalorder %s29, %s32
    %p41 = scmp.eq.s32.totalorder %s24, 1
    %p42 = por %p40, %p41
    %p43 = scmp.ne.s32.totalorder %s32, %s33
    %p44 = scmp.eq.s32.totalorder %s24, 0
    %p45 = por %p43, %p44
    %p46 = scmp.ne.s32.totalorder %s32, %s33
    %p47 = scmp.eq.s32.totalorder %s25, 1
    %p48 = por %p46, %p47
    %p50 = scmp.ne.s32.totalorder %s33, %s49
    %p51 = scmp.eq.s32.totalorder %s25, 0
    %p52 = por %p50, %p51
    %s54 = sadd.s32 %s53, 1
    %p57 = scmp.eq.s32.totalorder %s19, 1
    %p58 = scmp.ne.s32.totalorder %s53, %s55
    %p59 = scmp.eq.s32.totalorder %s19, 0
    %p60 = por %p58, %p59
    %p61 = scmp.ne.s32.totalorder %s53, %s55
    %p62 = scmp.eq.s32.totalorder %s24, 1
    %p63 = por %p61, %p62
    %p64 = scmp.ne.s32.totalorder %s55, %s56
    %p65 = scmp.eq.s32.totalorder %s24, 0
    %p66 = por %p64, %p65
    %p67 = scmp.ne.s32.totalorder %s55, %s56
    %p68 = scmp.eq.s32.totalorder %s25, 1
    %p69 = por %p67, %p68
    %p71 = scmp.ne.s32.totalorder %s56, %s70
    %p72 = scmp.eq.s32.totalorder %s25, 0
    %p73 = por %p71, %p72
    %s75 = sadd.s32 %s74, 1
    %p78 = scmp.eq.s32.totalorder %s19, 1
    %p79 = scmp.ne.s32.totalorder %s74, %s76
    %p80 = scmp.eq.s32.totalorder %s19, 0
    %p81 = por %p79, %p80
    %p82 = scmp.ne.s32.totalorder %s74, %s76
    %p83 = scmp.eq.s32.totalorder %s24, 1
    %p84 = por %p82, %p83
    %p85 = scmp.ne.s32.totalorder %s76, %s77
    %p86 = scmp.eq.s32.totalorder %s24, 0
    %p87 = por %p85, %p86
    %p88 = scmp.ne.s32.totalorder %s76, %s77
    %p89 = scmp.eq.s32.totalorder %s25, 1
    %p90 = por %p88, %p89
    %p92 = scmp.ne.s32.totalorder %s77, %s91
    %p93 = scmp.eq.s32.totalorder %s25, 0
    %p94 = por %p92, %p93
    %s96 = sadd.s32 %s95, 1
    %p99 = scmp.eq.s32.totalorder %s19, 1
    %p100 = scmp.ne.s32.totalorder %s95, %s97
    %p101 = scmp.eq.s32.totalorder %s19, 0
    %p102 = por %p100, %p101
    %p103 = scmp.ne.s32.totalorder %s95, %s97
    %p104 = scmp.eq.s32.totalorder %s24, 1
    %p105 = por %p103, %p104
    %p106 = scmp.ne.s32.totalorder %s97, %s98
    %p107 = scmp.eq.s32.totalorder %s24, 0
    %p108 = por %p106, %p107
    %p109 = scmp.ne.s32.totalorder %s97, %s98
    %p110 = scmp.eq.s32.totalorder %s25, 1
    %p111 = por %p109, %p110
    %p113 = scmp.ne.s32.totalorder %s98, %s112
    %p114 = scmp.eq.s32.totalorder %s25, 0
    %p115 = por %p113, %p114
    %s117 = sadd.s32 %s116, 1
    %p120 = scmp.eq.s32.totalorder %s19, 1
    %p121 = scmp.ne.s32.totalorder %s116, %s118
    %p122 = scmp.eq.s32.totalorder %s19, 0
    %p123 = por %p121, %p122
    %p124 = scmp.ne.s32.totalorder %s116, %s118
    %p125 = scmp.eq.s32.totalorder %s24, 1
    %p126 = por %p124, %p125
    %p127 = scmp.ne.s32.totalorder %s118, %s119
    %p128 = scmp.eq.s32.totalorder %s24, 0
    %p129 = por %p127, %p128
    %p130 = scmp.ne.s32.totalorder %s118, %s119
    %p131 = scmp.eq.s32.totalorder %s25, 1
    %p132 = por %p130, %p131
    %p134 = scmp.ne.s32.totalorder %s119, %s133
    %p135 = scmp.eq.s32.totalorder %s25, 0
    %p136 = por %p134, %p135
    %s138 = sadd.s32 %s137, 1
    %p141 = scmp.eq.s32.totalorder %s19, 1
    %p142 = scmp.ne.s32.totalorder %s137, %s139
    %p143 = scmp.eq.s32.totalorder %s19, 0
    %p144 = por %p142, %p143
    %p145 = scmp.ne.s32.totalorder %s137, %s139
    %p146 = scmp.eq.s32.totalorder %s24, 1
    %p147 = por %p145, %p146
    %p148 = scmp.ne.s32.totalorder %s139, %s140
    %p149 = scmp.eq.s32.totalorder %s24, 0
    %p150 = por %p148, %p149
    %p151 = scmp.ne.s32.totalorder %s139, %s140
    %p152 = scmp.eq.s32.totalorder %s25, 1
    %p153 = por %p151, %p152
    %p155 = scmp.ne.s32.totalorder %s140, %s154
    %p156 = scmp.eq.s32.totalorder %s25, 0
    %p157 = por %p155, %p156
    %s159 = sadd.s32 %s158, 1
    %p162 = scmp.eq.s32.totalorder %s19, 1
    %p163 = scmp.ne.s32.totalorder %s158, %s160
    %p164 = scmp.eq.s32.totalorder %s19, 0
    %p165 = por %p163, %p164
    %p166 = scmp.ne.s32.totalorder %s158, %s160
    %p167 = scmp.eq.s32.totalorder %s24, 1
    %p168 = por %p166, %p167
    %p169 = scmp.ne.s32.totalorder %s160, %s161
    %p170 = scmp.eq.s32.totalorder %s24, 0
    %p171 = por %p169, %p170
    %p172 = scmp.ne.s32.totalorder %s160, %s161
    %p173 = scmp.eq.s32.totalorder %s25, 1
    %p174 = por %p172, %p173
    %p176 = scmp.ne.s32.totalorder %s161, %s175
    %p177 = scmp.eq.s32.totalorder %s25, 0
    %p178 = por %p176, %p177
    %s180 = sadd.s32 %s179, 1
    %p183 = scmp.eq.s32.totalorder %s19, 1
    %p184 = scmp.ne.s32.totalorder %s179, %s181
    %p185 = scmp.eq.s32.totalorder %s19, 0
    %p186 = por %p184, %p185
    %p187 = scmp.ne.s32.totalorder %s179, %s181
    %p188 = scmp.eq.s32.totalorder %s24, 1
    %p189 = por %p187, %p188
    %p190 = scmp.ne.s32.totalorder %s181, %s182
    %p191 = scmp.eq.s32.totalorder %s24, 0
    %p192 = por %p190, %p191
    %p193 = scmp.ne.s32.totalorder %s181, %s182
    %p194 = scmp.eq.s32.totalorder %s25, 1
    %p195 = por %p193, %p194
    %p197 = scmp.ne.s32.totalorder %s182, %s196
    %p198 = scmp.eq.s32.totalorder %s25, 0
    %p199 = por %p197, %p198
    %s201 = sadd.s32 %s200, 1
    %p204 = scmp.eq.s32.totalorder %s19, 1
    %p205 = scmp.ne.s32.totalorder %s200, %s202
    %p206 = scmp.eq.s32.totalorder %s19, 0
    %p207 = por %p205, %p206
    %p208 = scmp.ne.s32.totalorder %s200, %s202
    %p209 = scmp.eq.s32.totalorder %s24, 1
    %p210 = por %p208, %p209
    %p211 = scmp.ne.s32.totalorder %s202, %s203
    %p212 = scmp.eq.s32.totalorder %s24, 0
    %p213 = por %p211, %p212
    %p214 = scmp.ne.s32.totalorder %s202, %s203
    %p215 = scmp.eq.s32.totalorder %s25, 1
    %p216 = por %p214, %p215
    %p218 = scmp.ne.s32.totalorder %s203, %s217
    %p219 = scmp.eq.s32.totalorder %s25, 0
    %p220 = por %p218, %p219
    %s222 = sadd.s32 %s221, 1
    %p225 = scmp.eq.s32.totalorder %s19, 1
    %p226 = scmp.ne.s32.totalorder %s221, %s223
    %p227 = scmp.eq.s32.totalorder %s19, 0
    %p228 = por %p226, %p227
    %p229 = scmp.ne.s32.totalorder %s221, %s223
    %p230 = scmp.eq.s32.totalorder %s24, 1
    %p231 = por %p229, %p230
    %p232 = scmp.ne.s32.totalorder %s223, %s224
    %p233 = scmp.eq.s32.totalorder %s24, 0
    %p234 = por %p232, %p233
    %p235 = scmp.ne.s32.totalorder %s223, %s224
    %p236 = scmp.eq.s32.totalorder %s25, 1
    %p237 = por %p235, %p236
    %p239 = scmp.ne.s32.totalorder %s224, %s238
    %p240 = scmp.eq.s32.totalorder %s25, 0
    %p241 = por %p239, %p240
    %s243 = sadd.s32 %s242, 1
    %p246 = scmp.eq.s32.totalorder %s19, 1
    %p247 = scmp.ne.s32.totalorder %s242, %s244
    %p248 = scmp.eq.s32.totalorder %s19, 0
    %p249 = por %p247, %p248
    %p250 = scmp.ne.s32.totalorder %s242, %s244
    %p251 = scmp.eq.s32.totalorder %s24, 1
    %p252 = por %p250, %p251
    %p253 = scmp.ne.s32.totalorder %s244, %s245
    %p254 = scmp.eq.s32.totalorder %s24, 0
    %p255 = por %p253, %p254
    %p256 = scmp.ne.s32.totalorder %s244, %s245
    %p257 = scmp.eq.s32.totalorder %s25, 1
    %p258 = por %p256, %p257
    %p260 = scmp.ne.s32.totalorder %s245, %s259
    %p261 = scmp.eq.s32.totalorder %s25, 0
    %p262 = por %p260, %p261
    %s264 = sadd.s32 %s263, 1
    %p267 = scmp.eq.s32.totalorder %s19, 1
    %p268 = scmp.ne.s32.totalorder %s263, %s265
    %p269 = scmp.eq.s32.totalorder %s19, 0
    %p270 = por %p268, %p269
    %p271 = scmp.ne.s32.totalorder %s263, %s265
    %p272 = scmp.eq.s32.totalorder %s24, 1
    %p273 = por %p271, %p272
    %p274 = scmp.ne.s32.totalorder %s265, %s266
    %p275 = scmp.eq.s32.totalorder %s24, 0
    %p276 = por %p274, %p275
    %p277 = scmp.ne.s32.totalorder %s265, %s266
    %p278 = scmp.eq.s32.totalorder %s25, 1
    %p279 = por %p277, %p278
    %p281 = scmp.ne.s32.totalorder %s266, %s280
    %p282 = scmp.eq.s32.totalorder %s25, 0
    %p283 = por %p281, %p282
    %s285 = sadd.s32 %s284, 1
    %p288 = scmp.eq.s32.totalorder %s19, 1
    %p289 = scmp.ne.s32.totalorder %s284, %s286
    %p290 = scmp.eq.s32.totalorder %s19, 0
    %p291 = por %p289, %p290
    %p292 = scmp.ne.s32.totalorder %s284, %s286
    %p293 = scmp.eq.s32.totalorder %s24, 1
    %p294 = por %p292, %p293
    %p295 = scmp.ne.s32.totalorder %s286, %s287
    %p296 = scmp.eq.s32.totalorder %s24, 0
    %p297 = por %p295, %p296
    %p298 = scmp.ne.s32.totalorder %s286, %s287
    %p299 = scmp.eq.s32.totalorder %s25, 1
    %p300 = por %p298, %p299
    %p302 = scmp.ne.s32.totalorder %s287, %s301
    %p303 = scmp.eq.s32.totalorder %s25, 0
    %p304 = por %p302, %p303
    %s305 = ssub.s32 %s19, %s26
    %p306 = scmp.eq.s32.totalorder %s305, 0
    %s308 = sadd.s32 %s307, 1
    %s309 = scalar_select %p306, %s307, %s308
    %p312 = pneg %p306
    %p313 = scmp.eq.s32.totalorder %s19, 1
    %p314 = por %p312, %p313
    %p315 = scmp.ne.s32.totalorder %s307, %s310
    %p316 = scmp.eq.s32.totalorder %s19, 0
    %p317 = por %p315, %p316
    %p318 = scmp.ne.s32.totalorder %s307, %s310
    %p319 = scmp.eq.s32.totalorder %s24, 1
    %p320 = por %p318, %p319
    %p321 = scmp.ne.s32.totalorder %s310, %s311
    %p322 = scmp.eq.s32.totalorder %s24, 0
    %p323 = por %p321, %p322
    %p324 = scmp.ne.s32.totalorder %s310, %s311
    %p325 = scmp.eq.s32.totalorder %s25, 1
    %p326 = por %p324, %p325
    %p328 = scmp.ne.s32.totalorder %s311, %s327
    %p329 = scmp.eq.s32.totalorder %s25, 0
    %p330 = por %p328, %p329
    %p331 = scmp.le.s32.totalorder 1, %s19
    %p332 = scmp.lt.s32.totalorder %s19, 3
    %p333 = pnand %p331, %p332
    %p334 = pneg %p333
    // Predicated region
    $region9: #{forward_batch.3} parent=5 // pred_check
      _
    $region10: #{forward_batch.3} parent=5 // pred_check_branch
      %336 = sbr.rel (%p333) target = $region12
    $region11: #{forward_batch.3} parent=5 // pred_region
      %s337 = ssub.s32 %s19, 1
      // Predicated region
      $region13: #{forward_batch.3} parent=11 // pred_check
        %p338 = pneg %p66
      $region14: #{forward_batch.3} parent=11 // pred_check_branch
        %340 = sbr.rel (%p338) target = $region16
      $region15: #{forward_batch.3} parent=11 // pred_region
        _
      $region16: #{forward_batch.3} parent=11 // pred_fallthru
        _
      // Predicated region
      $region17: #{forward_batch.3} parent=11 // pred_check
        %p341 = pneg %p87
      $region18: #{forward_batch.3} parent=11 // pred_check_branch
        %343 = sbr.rel (%p341) target = $region20
      $region19: #{forward_batch.3} parent=11 // pred_region
        _
      $region20: #{forward_batch.3} parent=11 // pred_fallthru
        _
      // Predicated region
      $region21: #{forward_batch.3} parent=11 // pred_check
        %p344 = pneg %p108
      $region22: #{forward_batch.3} parent=11 // pred_check_branch
        %346 = sbr.rel (%p344) target = $region24
      $region23: #{forward_batch.3} parent=11 // pred_region
        _
      $region24: #{forward_batch.3} parent=11 // pred_fallthru
        _
      // Predicated region
      $region25: #{forward_batch.3} parent=11 // pred_check
        %p347 = pneg %p129
      $region26: #{forward_batch.3} parent=11 // pred_check_branch
        %349 = sbr.rel (%p347) target = $region28
      $region27: #{forward_batch.3} parent=11 // pred_region
        _
      $region28: #{forward_batch.3} parent=11 // pred_fallthru
        _
      // Predicated region
      $region29: #{forward_batch.3} parent=11 // pred_check
        %p350 = pneg %p150
      $region30: #{forward_batch.3} parent=11 // pred_check_branch
        %352 = sbr.rel (%p350) target = $region32
      $region31: #{forward_batch.3} parent=11 // pred_region
        _
      $region32: #{forward_batch.3} parent=11 // pred_fallthru
        _
      // Predicated region
      $region33: #{forward_batch.3} parent=11 // pred_check
        %p353 = pneg %p171
      $region34: #{forward_batch.3} parent=11 // pred_check_branch
        %355 = sbr.rel (%p353) target = $region36
      $region35: #{forward_batch.3} parent=11 // pred_region
        _
      $region36: #{forward_batch.3} parent=11 // pred_fallthru
        _
      // Predicated region
      $region37: #{forward_batch.3} parent=11 // pred_check
        %p356 = pneg %p192
      $region38: #{forward_batch.3} parent=11 // pred_check_branch
        %358 = sbr.rel (%p356) target = $region40
      $region39: #{forward_batch.3} parent=11 // pred_region
        _
      $region40: #{forward_batch.3} parent=11 // pred_fallthru
        _
      // Predicated region
      $region41: #{forward_batch.3} parent=11 // pred_check
        %p359 = pneg %p213
      $region42: #{forward_batch.3} parent=11 // pred_check_branch
        %361 = sbr.rel (%p359) target = $region44
      $region43: #{forward_batch.3} parent=11 // pred_region
        _
      $region44: #{forward_batch.3} parent=11 // pred_fallthru
        _
      // Predicated region
      $region45: #{forward_batch.3} parent=11 // pred_check
        %p362 = pneg %p234
      $region46: #{forward_batch.3} parent=11 // pred_check_branch
        %364 = sbr.rel (%p362) target = $region48
      $region47: #{forward_batch.3} parent=11 // pred_region
        _
      $region48: #{forward_batch.3} parent=11 // pred_fallthru
        _
      // Predicated region
      $region49: #{forward_batch.3} parent=11 // pred_check
        %p365 = pneg %p255
      $region50: #{forward_batch.3} parent=11 // pred_check_branch
        %367 = sbr.rel (%p365) target = $region52
      $region51: #{forward_batch.3} parent=11 // pred_region
        _
      $region52: #{forward_batch.3} parent=11 // pred_fallthru
        _
      // Predicated region
      $region53: #{forward_batch.3} parent=11 // pred_check
        %p368 = pneg %p276
      $region54: #{forward_batch.3} parent=11 // pred_check_branch
        %370 = sbr.rel (%p368) target = $region56
      $region55: #{forward_batch.3} parent=11 // pred_region
        _
      $region56: #{forward_batch.3} parent=11 // pred_fallthru
        _
      // Predicated region
      $region57: #{forward_batch.3} parent=11 // pred_check
        %p371 = pneg %p297
      $region58: #{forward_batch.3} parent=11 // pred_check_branch
        %373 = sbr.rel (%p371) target = $region60
      $region59: #{forward_batch.3} parent=11 // pred_region
        _
      $region60: #{forward_batch.3} parent=11 // pred_fallthru
        _
    $region12: #{forward_batch.3} parent=5 // pred_fallthru
      _
    %p374 = scmp.lt.s32.totalorder %s19, 2
    // Predicated region
    $region61: #{forward_batch.3} parent=5 // pred_check
      %p375 = pneg %p374
    $region62: #{forward_batch.3} parent=5 // pred_check_branch
      %377 = sbr.rel (%p375) target = $region64
    $region63: #{forward_batch.3} parent=5 // pred_region
      // Predicated region
      $region65: #{forward_batch.3} parent=63 // pred_check
        %p378 = pneg %p39
      $region66: #{forward_batch.3} parent=63 // pred_check_branch
        %380 = sbr.rel (%p378) target = $region68
      $region67: #{forward_batch.3} parent=63 // pred_region
        %p381 = scmp.lt.s32.totalorder %s19, 1
        %s382 = scalar_select %p381, %s19, 1
        %s383 = smul.addr %s382, 4
        %s384 = scalar_lea.vmem %s0, %s383
      $region68: #{forward_batch.3} parent=63 // pred_fallthru
        _
    $region64: #{forward_batch.3} parent=5 // pred_fallthru
      _
    %p385 = scmp.le.s32.totalorder 1, %s19
    %p386 = scmp.lt.s32.totalorder %s19, 3
    %p387 = pnand %p385, %p386
    %p388 = pneg %p387
    // Predicated region
    $region69: #{forward_batch.3} parent=5 // pred_check
      _
    $region70: #{forward_batch.3} parent=5 // pred_check_branch
      %390 = sbr.rel (%p387) target = $region72
    $region71: #{forward_batch.3} parent=5 // pred_region
      %s391 = ssub.s32 %s19, 1
      %p392 = scmp.lt.s32.totalorder %s24, 1
      %s393 = scalar_select %p392, %s24, 1
      %s394 = smul.addr %s393, 4
      %s395 = scalar_lea.vmem %s0, %s394
      %p396 = pneg %p45
      %p397 = pneg %p42
      %p398 = pneg %p66
      %p399 = pneg %p63
      %p400 = pneg %p87
      %p401 = pneg %p84
      %p402 = pneg %p108
      %p403 = pneg %p105
      %p404 = pneg %p129
      %p405 = pneg %p126
      %p406 = pneg %p150
      %p407 = pneg %p147
      %p408 = pneg %p171
      %p409 = pneg %p168
      %p410 = pneg %p192
      %p411 = pneg %p189
      %p412 = pneg %p213
      %p413 = pneg %p210
      %p414 = pneg %p234
      %p415 = pneg %p231
      %p416 = pneg %p255
      %p417 = pneg %p252
      %p418 = pneg %p276
      %p419 = pneg %p273
      %p420 = pneg %p297
      %p421 = pneg %p294
      %p422 = pneg %p323
      %p423 = pneg %p320
      %p424 = scmp.lt.s32.totalorder %s24, 1
      %s425 = scalar_select %p424, %s24, 1
      %s426 = smul.addr %s425, 4
      %s427 = scalar_lea.vmem %s13, %s426
      %p428 = scmp.lt.s32.totalorder %s24, 1
      %s429 = scalar_select %p428, %s24, 1
      %s430 = smul.addr %s429, 4
      %s431 = scalar_lea.vmem %s0, %s430
      %p432 = scmp.lt.s32.totalorder %s24, 1
      %s433 = scalar_select %p432, %s24, 1
      %s434 = smul.addr %s433, 4
      %s435 = scalar_lea.vmem %s13, %s434
      %v437 = vld [vmem:[%s431] sm:$0xf]
      %v438 = vunpack.c.l.bf16 %v437
      %v439 = vld [vmem:[%s1] sm:$0x1]
      %v440 = vld [vmem:[%s2] sm:$0x1]
      %vm441 = vcmask 261120
      %v442 = vsel %vm441, %v438, 0.0
      %443 = vadd.xlane.f32.xlu0 %v442
      %v444 = vpop.xlane.xlu0 %443
      %v445 = vrcp.pop 32.0
      %v446 = vmul.f32 %v444, %v445
      %v447 = vsub.f32 %v438, %v446
      %v448 = vmul.f32 %v447, %v447
      %v449 = vsel %vm441, %v448, 0.0
      %450 = vadd.xlane.f32.xlu0 %v449
      %v451 = vpop.xlane.xlu0 %450
      %v452 = vmul.f32 %v451, %v445
      %v453 = vadd.f32 %v452, 1e-05
      %v454 = vrsqrt.pop %v453
      %v455 = vmul.f32 %v447, %v454
      %v457 = vlaneseq
      %v458 = vshrl.u32 %v457, 7
      %v459 = vsub.s32 0, %v458
      %v460 = vrot.slane %v439, %v459
      %v462 = vmul.f32 %v455, %v460
      %v464 = vlaneseq
      %v465 = vshrl.u32 %v464, 7
      %v466 = vsub.s32 0, %v465
      %v467 = vrot.slane %v440, %v466
      %v469 = vadd.f32 %v462, %v467
      %v470 = vpack.c.bf16 %v469, %v469
      %v471 = vld [vmem:[%s3] sm:$0xf]
      %v472 = vld [vmem:[%s3 + $0x4] sm:$0xf]
      %v473 = vld [vmem:[%s3 + $0x8] sm:$0xf]
      %v474 = vld [vmem:[%s3 + $0xc] sm:$0xf]
      %v475 = vld [vmem:[%s4] sm:$0x1]
      %v477 = vlaneseq
      %v478 = vshrl.u32 %v477, 7
      %v479 = vsub.s32 0, %v478
      %v480 = vrot.slane %v475, %v479
      %v486 = vunpack.c.l.b16 %v471
      %v487 = vunpack.c.l.b16 %v472
      %v488 = vunpack.c.l.b16 %v473
      %v489 = vunpack.c.l.b16 %v474
      %v490 = vpack.c.b16 %v487, %v486
      %v491 = vpack.c.b16 %v489, %v488
      %v495 = vsel %vm441, %v470, 0
      %497 = vmatprep.subr.bf16.mxu0 0
      %498 = vmatpush1.bf16.msra.mxu0 0
      %499 = vmatprep.subr.bf16.mxu0 0
      %500 = vmatpush1.bf16.msra.mxu0 0
      %501 = vmatprep.subr.bf16.mxu0 0
      %502 = vmatpush1.bf16.msra.mxu0 0
      %503 = vmatprep.subr.bf16.mxu0 0
      %504 = vmatpush1.bf16.msra.mxu0 0
      %505 = vmatprep.subr.bf16.mxu0 0
      %506 = vmatpush1.bf16.msra.mxu0 0
      %507 = vmatprep.subr.bf16.mxu0 0
      %508 = vmatpush1.bf16.msra.mxu0 0
      %509 = vmatprep.subr.bf16.mxu0 0
      %510 = vmatpush1.bf16.msra.mxu0 %v491
      %511 = vmatprep.subr.bf16.mxu0 0
      %512 = vmatpush1.bf16.msra.mxu0 %v490
      %513 = vmatprep.subr.bf16.mxu0 0
      %514 = vmatpush2.bf16.msra.mxu0 0
      %515 = vmatprep.subr.bf16.mxu0 0
      %516 = vmatpush2.bf16.msra.mxu0 0
      %517 = vmatprep.subr.bf16.mxu0 0
      %518 = vmatpush2.bf16.msra.mxu0 0
      %519 = vmatprep.subr.bf16.mxu0 0
      %520 = vmatpush2.bf16.msra.mxu0 0
      %521 = vmatprep.subr.bf16.mxu0 0
      %522 = vmatpush2.bf16.msra.mxu0 0
      %523 = vmatprep.subr.bf16.mxu0 0
      %524 = vmatpush2.bf16.msra.mxu0 0
      %525 = vmatprep.subr.bf16.mxu0 0
      %526 = vmatpush2.bf16.msra.mxu0 0
      %527 = vmatprep.subr.bf16.mxu0 0
      %528 = vmatpush2.bf16.msra.mxu0 0
      %529 = vmatprep.mubr.bf16.mxu0 0
      %530 = vmatmul.mubr.bf16.gmra.mxu0 %v495
      %v531 = vpop.f32.mrf.mxu0
      %v532 = vadd.f32 %v480, %v531
      %v533 = vpop.f32.mrf.mxu0
      %v534 = vpop.f32.mrf.mxu0
      %v535 = vpop.f32.mrf.mxu0
      %536 = vdwg.mxu0
      %v537 = vlaneseq
      %v538 = vshrl.u32 %v537, 7
      %v539 = vlaneseq
      %v540 = vand.u32 %v539, 127
      %vm541 = vcmp.ge.s32.totalorder %v538, %v540
      %v542 = vpack.c.bf16 %v532, %v532
      %544 = vrot.lane.b32.xlu0 %v542, 96
      %v545 = vpop.permute.xlu0 %544
      %vm546 = vcmask 64512
      %v548 = vsel %vm546, %v542, 0
      %v551 = vsel %vm546, %v545, 0
      %553 = vmatprep.subr.bf16.mxu0 0
      %554 = vmatpush1.bf16.xpose.msra.mxu0 0
      %555 = vmatprep.subr.bf16.mxu0 0
      %556 = vmatpush1.bf16.xpose.msra.mxu0 0
      %557 = vmatprep.subr.bf16.mxu0 0
      %558 = vmatpush1.bf16.xpose.msra.mxu0 0
      %559 = vmatprep.subr.bf16.mxu0 0
      %560 = vmatpush1.bf16.xpose.msra.mxu0 0
      %561 = vmatprep.subr.bf16.mxu0 0
      %562 = vmatpush1.bf16.xpose.msra.mxu0 0
      %563 = vmatprep.subr.bf16.mxu0 0
      %564 = vmatpush1.bf16.xpose.msra.mxu0 0
      %565 = vmatprep.subr.bf16.mxu0 0
      %566 = vmatpush1.bf16.xpose.msra.mxu0 0
      %567 = vmatprep.subr.bf16.mxu0 0
      %568 = vmatpush1.bf16.xpose.msra.mxu0 %v551
      %569 = vmatprep.subr.bf16.mxu0 0
      %570 = vmatpush2.bf16.xpose.msra.mxu0 0
      %571 = vmatprep.subr.bf16.mxu0 0
      %572 = vmatpush2.bf16.xpose.msra.mxu0 0
      %573 = vmatprep.subr.bf16.mxu0 0
      %574 = vmatpush2.bf16.xpose.msra.mxu0 0
      %575 = vmatprep.subr.bf16.mxu0 0
      %576 = vmatpush2.bf16.xpose.msra.mxu0 0
      %577 = vmatprep.subr.bf16.mxu0 0
      %578 = vmatpush2.bf16.xpose.msra.mxu0 0
      %579 = vmatprep.subr.bf16.mxu0 0
      %580 = vmatpush2.bf16.xpose.msra.mxu0 0
      %581 = vmatprep.subr.bf16.mxu0 0
      %582 = vmatpush2.bf16.xpose.msra.mxu0 0
      %583 = vmatprep.subr.bf16.mxu0 0
      %584 = vmatpush2.bf16.xpose.msra.mxu0 0
      %585 = vmatprep.mubr.bf16.mxu0 0
      %586 = vmatmul.mubr.bf16.gmra.mxu0 %v548
      %v587 = vpop.f32.mrf.mxu0
      %v588 = vadd.f32 0.0, %v587
      %v589 = vpop.f32.mrf.mxu0
      %v590 = vpop.f32.mrf.mxu0
      %v591 = vpop.f32.mrf.mxu0
      %592 = vdwg.mxu0
      %v593 = vmul.f32 %v588, 0.35355338
      %v594 = vsel %vm541, %v593, -1e+30
      %v595 = vsel %vm546, %v594, -inf
      %596 = vmax.xlane.f32.xlu0 %v595
      %v597 = vpop.xlane.xlu0 %596
      %v598 = vsub.f32 %v594, %v597
      %v599 = vmul.f32 %v598, 1.442695
      %v600 = vpow.pop %v599
      %v601 = vsel %vm546, %v600, 0.0
      %602 = vadd.xlane.f32.xlu0 %v601
      %v603 = vpop.xlane.xlu0 %602
      %v604 = vrcp.pop %v603
      %v605 = vmul.f32 %v600, %v604
      %v606 = vpack.c.bf16 %v605, %v605
      %607 = vrot.lane.b32.xlu0 %v542, 64
      %v608 = vpop.permute.xlu0 %607
      %v610 = vsel %vm546, %v606, 0
      %vm612 = vcmask 1043456
      %v614 = vsel %vm612, %v608, 0
      %616 = vmatprep.subr.bf16.mxu0 0
      %617 = vmatpush1.bf16.msra.mxu0 0
      %618 = vmatprep.subr.bf16.mxu0 0
      %619 = vmatpush1.bf16.msra.mxu0 0
      %620 = vmatprep.subr.bf16.mxu0 0
      %621 = vmatpush1.bf16.msra.mxu0 0
      %622 = vmatprep.subr.bf16.mxu0 0
      %623 = vmatpush1.bf16.msra.mxu0 0
      %624 = vmatprep.subr.bf16.mxu0 0
      %625 = vmatpush1.bf16.msra.mxu0 0
      %626 = vmatprep.subr.bf16.mxu0 0
      %627 = vmatpush1.bf16.msra.mxu0 0
      %628 = vmatprep.subr.bf16.mxu0 0
      %629 = vmatpush1.bf16.msra.mxu0 0
      %630 = vmatprep.subr.bf16.mxu0 0
      %631 = vmatpush1.bf16.msra.mxu0 %v614
      %632 = vmatprep.subr.bf16.mxu0 0
      %633 = vmatpush2.bf16.msra.mxu0 0
      %634 = vmatprep.subr.bf16.mxu0 0
      %635 = vmatpush2.bf16.msra.mxu0 0
      %636 = vmatprep.subr.bf16.mxu0 0
      %637 = vmatpush2.bf16.msra.mxu0 0
      %638 = vmatprep.subr.bf16.mxu0 0
      %639 = vmatpush2.bf16.msra.mxu0 0
      %640 = vmatprep.subr.bf16.mxu0 0
      %641 = vmatpush2.bf16.msra.mxu0 0
      %642 = vmatprep.subr.bf16.mxu0 0
      %643 = vmatpush2.bf16.msra.mxu0 0
      %644 = vmatprep.subr.bf16.mxu0 0
      %645 = vmatpush2.bf16.msra.mxu0 0
      %646 = vmatprep.subr.bf16.mxu0 0
      %647 = vmatpush2.bf16.msra.mxu0 0
      %648 = vmatprep.mubr.bf16.mxu0 0
      %649 = vmatmul.mubr.bf16.gmra.mxu0 %v610
      %v650 = vpop.f32.mrf.mxu0
      %v651 = vadd.f32 0.0, %v650
      %v652 = vpop.f32.mrf.mxu0
      %v653 = vpop.f32.mrf.mxu0
      %v654 = vpop.f32.mrf.mxu0
      %655 = vdwg.mxu0
      %656 = vrot.lane.b32.xlu0 %v542, 120
      %v657 = vpop.permute.xlu0 %656
      %658 = vrot.lane.b32.xlu0 %v542, 88
      %v659 = vpop.permute.xlu0 %658
      %v661 = vsel %vm546, %v657, 0
      %v664 = vsel %vm546, %v659, 0
      %666 = vmatprep.subr.bf16.mxu0 0
      %667 = vmatpush1.bf16.xpose.msra.mxu0 0
      %668 = vmatprep.subr.bf16.mxu0 0
      %669 = vmatpush1.bf16.xpose.msra.mxu0 0
      %670 = vmatprep.subr.bf16.mxu0 0
      %671 = vmatpush1.bf16.xpose.msra.mxu0 0
      %672 = vmatprep.subr.bf16.mxu0 0
      %673 = vmatpush1.bf16.xpose.msra.mxu0 0
      %674 = vmatprep.subr.bf16.mxu0 0
      %675 = vmatpush1.bf16.xpose.msra.mxu0 0
      %676 = vmatprep.subr.bf16.mxu0 0
      %677 = vmatpush1.bf16.xpose.msra.mxu0 0
      %678 = vmatprep.subr.bf16.mxu0 0
      %679 = vmatpush1.bf16.xpose.msra.mxu0 0
      %680 = vmatprep.subr.bf16.mxu0 0
      %681 = vmatpush1.bf16.xpose.msra.mxu0 %v664
      %682 = vmatprep.subr.bf16.mxu0 0
      %683 = vmatpush2.bf16.xpose.msra.mxu0 0
      %684 = vmatprep.subr.bf16.mxu0 0
      %685 = vmatpush2.bf16.xpose.msra.mxu0 0
      %686 = vmatprep.subr.bf16.mxu0 0
      %687 = vmatpush2.bf16.xpose.msra.mxu0 0
      %688 = vmatprep.subr.bf16.mxu0 0
      %689 = vmatpush2.bf16.xpose.msra.mxu0 0
      %690 = vmatprep.subr.bf16.mxu0 0
      %691 = vmatpush2.bf16.xpose.msra.mxu0 0
      %692 = vmatprep.subr.bf16.mxu0 0
      %693 = vmatpush2.bf16.xpose.msra.mxu0 0
      %694 = vmatprep.subr.bf16.mxu0 0
      %695 = vmatpush2.bf16.xpose.msra.mxu0 0
      %696 = vmatprep.subr.bf16.mxu0 0
      %697 = vmatpush2.bf16.xpose.msra.mxu0 0
      %698 = vmatprep.mubr.bf16.mxu0 0
      %699 = vmatmul.mubr.bf16.gmra.mxu0 %v661
      %v700 = vpop.f32.mrf.mxu0
      %v701 = vadd.f32 0.0, %v700
      %v702 = vpop.f32.mrf.mxu0
      %v703 = vpop.f32.mrf.mxu0
      %v704 = vpop.f32.mrf.mxu0
      %705 = vdwg.mxu0
      %v706 = vmul.f32 %v701, 0.35355338
      %v707 = vsel %vm541, %v706, -1e+30
      %v708 = vsel %vm546, %v707, -inf
      %709 = vmax.xlane.f32.xlu0 %v708
      %v710 = vpop.xlane.xlu0 %709
      %v711 = vsub.f32 %v707, %v710
      %v712 = vmul.f32 %v711, 1.442695
      %v713 = vpow.pop %v712
      %v714 = vsel %vm546, %v713, 0.0
      %715 = vadd.xlane.f32.xlu0 %v714
      %v716 = vpop.xlane.xlu0 %715
      %v717 = vrcp.pop %v716
      %v718 = vmul.f32 %v713, %v717
      %v719 = vpack.c.bf16 %v718, %v718
      %720 = vrot.lane.b32.xlu0 %v542, 56
      %v721 = vpop.permute.xlu0 %720
      %v723 = vsel %vm546, %v719, 0
      %v726 = vsel %vm612, %v721, 0
      %728 = vmatprep.subr.bf16.mxu0 0
      %729 = vmatpush1.bf16.msra.mxu0 0
      %730 = vmatprep.subr.bf16.mxu0 0
      %731 = vmatpush1.bf16.msra.mxu0 0
      %732 = vmatprep.subr.bf16.mxu0 0
      %733 = vmatpush1.bf16.msra.mxu0 0
      %734 = vmatprep.subr.bf16.mxu0 0
      %735 = vmatpush1.bf16.msra.mxu0 0
      %736 = vmatprep.subr.bf16.mxu0 0
      %737 = vmatpush1.bf16.msra.mxu0 0
      %738 = vmatprep.subr.bf16.mxu0 0
      %739 = vmatpush1.bf16.msra.mxu0 0
      %740 = vmatprep.subr.bf16.mxu0 0
      %741 = vmatpush1.bf16.msra.mxu0 0
      %742 = vmatprep.subr.bf16.mxu0 0
      %743 = vmatpush1.bf16.msra.mxu0 %v726
      %744 = vmatprep.subr.bf16.mxu0 0
      %745 = vmatpush2.bf16.msra.mxu0 0
      %746 = vmatprep.subr.bf16.mxu0 0
      %747 = vmatpush2.bf16.msra.mxu0 0
      %748 = vmatprep.subr.bf16.mxu0 0
      %749 = vmatpush2.bf16.msra.mxu0 0
      %750 = vmatprep.subr.bf16.mxu0 0
      %751 = vmatpush2.bf16.msra.mxu0 0
      %752 = vmatprep.subr.bf16.mxu0 0
      %753 = vmatpush2.bf16.msra.mxu0 0
      %754 = vmatprep.subr.bf16.mxu0 0
      %755 = vmatpush2.bf16.msra.mxu0 0
      %756 = vmatprep.subr.bf16.mxu0 0
      %757 = vmatpush2.bf16.msra.mxu0 0
      %758 = vmatprep.subr.bf16.mxu0 0
      %759 = vmatpush2.bf16.msra.mxu0 0
      %760 = vmatprep.mubr.bf16.mxu0 0
      %761 = vmatmul.mubr.bf16.gmra.mxu0 %v723
      %v762 = vpop.f32.mrf.mxu0
      %v763 = vadd.f32 0.0, %v762
      %v764 = vpop.f32.mrf.mxu0
      %v765 = vpop.f32.mrf.mxu0
      %v766 = vpop.f32.mrf.mxu0
      %767 = vdwg.mxu0
      %768 = vrot.lane.b32.xlu0 %v542, 112
      %v769 = vpop.permute.xlu0 %768
      %770 = vrot.lane.b32.xlu0 %v542, 80
      %v771 = vpop.permute.xlu0 %770
      %v773 = vsel %vm546, %v769, 0
      %v776 = vsel %vm546, %v771, 0
      %778 = vmatprep.subr.bf16.mxu0 0
      %779 = vmatpush1.bf16.xpose.msra.mxu0 0
      %780 = vmatprep.subr.bf16.mxu0 0
      %781 = vmatpush1.bf16.xpose.msra.mxu0 0
      %782 = vmatprep.subr.bf16.mxu0 0
      %783 = vmatpush1.bf16.xpose.msra.mxu0 0
      %784 = vmatprep.subr.bf16.mxu0 0
      %785 = vmatpush1.bf16.xpose.msra.mxu0 0
      %786 = vmatprep.subr.bf16.mxu0 0
      %787 = vmatpush1.bf16.xpose.msra.mxu0 0
      %788 = vmatprep.subr.bf16.mxu0 0
      %789 = vmatpush1.bf16.xpose.msra.mxu0 0
      %790 = vmatprep.subr.bf16.mxu0 0
      %791 = vmatpush1.bf16.xpose.msra.mxu0 0
      %792 = vmatprep.subr.bf16.mxu0 0
      %793 = vmatpush1.bf16.xpose.msra.mxu0 %v776
      %794 = vmatprep.subr.bf16.mxu0 0
      %795 = vmatpush2.bf16.xpose.msra.mxu0 0
      %796 = vmatprep.subr.bf16.mxu0 0
      %797 = vmatpush2.bf16.xpose.msra.mxu0 0
      %798 = vmatprep.subr.bf16.mxu0 0
      %799 = vmatpush2.bf16.xpose.msra.mxu0 0
      %800 = vmatprep.subr.bf16.mxu0 0
      %801 = vmatpush2.bf16.xpose.msra.mxu0 0
      %802 = vmatprep.subr.bf16.mxu0 0
      %803 = vmatpush2.bf16.xpose.msra.mxu0 0
      %804 = vmatprep.subr.bf16.mxu0 0
      %805 = vmatpush2.bf16.xpose.msra.mxu0 0
      %806 = vmatprep.subr.bf16.mxu0 0
      %807 = vmatpush2.bf16.xpose.msra.mxu0 0
      %808 = vmatprep.subr.bf16.mxu0 0
      %809 = vmatpush2.bf16.xpose.msra.mxu0 0
      %810 = vmatprep.mubr.bf16.mxu0 0
      %811 = vmatmul.mubr.bf16.gmra.mxu0 %v773
      %v812 = vpop.f32.mrf.mxu0
      %v813 = vadd.f32 0.0, %v812
      %v814 = vpop.f32.mrf.mxu0
      %v815 = vpop.f32.mrf.mxu0
      %v816 = vpop.f32.mrf.mxu0
      %817 = vdwg.mxu0
      %v818 = vmul.f32 %v813, 0.35355338
      %v819 = vsel %vm541, %v818, -1e+30
      %v820 = vsel %vm546, %v819, -inf
      %821 = vmax.xlane.f32.xlu0 %v820
      %v822 = vpop.xlane.xlu0 %821
      %v823 = vsub.f32 %v819, %v822
      %v824 = vmul.f32 %v823, 1.442695
      %v825 = vpow.pop %v824
      %v826 = vsel %vm546, %v825, 0.0
      %827 = vadd.xlane.f32.xlu0 %v826
      %v828 = vpop.xlane.xlu0 %827
      %v829 = vrcp.pop %v828
      %v830 = vmul.f32 %v825, %v829
      %v831 = vpack.c.bf16 %v830, %v830
      %832 = vrot.lane.b32.xlu0 %v542, 48
      %v833 = vpop.permute.xlu0 %832
      %v835 = vsel %vm546, %v831, 0
      %v838 = vsel %vm612, %v833, 0
      %840 = vmatprep.subr.bf16.mxu0 0
      %841 = vmatpush1.bf16.msra.mxu0 0
      %842 = vmatprep.subr.bf16.mxu0 0
      %843 = vmatpush1.bf16.msra.mxu0 0
      %844 = vmatprep.subr.bf16.mxu0 0
      %845 = vmatpush1.bf16.msra.mxu0 0
      %846 = vmatprep.subr.bf16.mxu0 0
      %847 = vmatpush1.bf16.msra.mxu0 0
      %848 = vmatprep.subr.bf16.mxu0 0
      %849 = vmatpush1.bf16.msra.mxu0 0
      %850 = vmatprep.subr.bf16.mxu0 0
      %851 = vmatpush1.bf16.msra.mxu0 0
      %852 = vmatprep.subr.bf16.mxu0 0
      %853 = vmatpush1.bf16.msra.mxu0 0
      %854 = vmatprep.subr.bf16.mxu0 0
      %855 = vmatpush1.bf16.msra.mxu0 %v838
      %856 = vmatprep.subr.bf16.mxu0 0
      %857 = vmatpush2.bf16.msra.mxu0 0
      %858 = vmatprep.subr.bf16.mxu0 0
      %859 = vmatpush2.bf16.msra.mxu0 0
      %860 = vmatprep.subr.bf16.mxu0 0
      %861 = vmatpush2.bf16.msra.mxu0 0
      %862 = vmatprep.subr.bf16.mxu0 0
      %863 = vmatpush2.bf16.msra.mxu0 0
      %864 = vmatprep.subr.bf16.mxu0 0
      %865 = vmatpush2.bf16.msra.mxu0 0
      %866 = vmatprep.subr.bf16.mxu0 0
      %867 = vmatpush2.bf16.msra.mxu0 0
      %868 = vmatprep.subr.bf16.mxu0 0
      %869 = vmatpush2.bf16.msra.mxu0 0
      %870 = vmatprep.subr.bf16.mxu0 0
      %871 = vmatpush2.bf16.msra.mxu0 0
      %872 = vmatprep.mubr.bf16.mxu0 0
      %873 = vmatmul.mubr.bf16.gmra.mxu0 %v835
      %v874 = vpop.f32.mrf.mxu0
      %v875 = vadd.f32 0.0, %v874
      %v876 = vpop.f32.mrf.mxu0
      %v877 = vpop.f32.mrf.mxu0
      %v878 = vpop.f32.mrf.mxu0
      %879 = vdwg.mxu0
      %880 = vrot.lane.b32.xlu0 %v542, 104
      %v881 = vpop.permute.xlu0 %880
      %882 = vrot.lane.b32.xlu0 %v542, 72
      %v883 = vpop.permute.xlu0 %882
      %v885 = vsel %vm546, %v881, 0
      %v888 = vsel %vm546, %v883, 0
      %890 = vmatprep.subr.bf16.mxu0 0
      %891 = vmatpush1.bf16.xpose.msra.mxu0 0
      %892 = vmatprep.subr.bf16.mxu0 0
      %893 = vmatpush1.bf16.xpose.msra.mxu0 0
      %894 = vmatprep.subr.bf16.mxu0 0
      %895 = vmatpush1.bf16.xpose.msra.mxu0 0
      %896 = vmatprep.subr.bf16.mxu0 0
      %897 = vmatpush1.bf16.xpose.msra.mxu0 0
      %898 = vmatprep.subr.bf16.mxu0 0
      %899 = vmatpush1.bf16.xpose.msra.mxu0 0
      %900 = vmatprep.subr.bf16.mxu0 0
      %901 = vmatpush1.bf16.xpose.msra.mxu0 0
      %902 = vmatprep.subr.bf16.mxu0 0
      %903 = vmatpush1.bf16.xpose.msra.mxu0 0
      %904 = vmatprep.subr.bf16.mxu0 0
      %905 = vmatpush1.bf16.xpose.msra.mxu0 %v888
      %906 = vmatprep.subr.bf16.mxu0 0
      %907 = vmatpush2.bf16.xpose.msra.mxu0 0
      %908 = vmatprep.subr.bf16.mxu0 0
      %909 = vmatpush2.bf16.xpose.msra.mxu0 0
      %910 = vmatprep.subr.bf16.mxu0 0
      %911 = vmatpush2.bf16.xpose.msra.mxu0 0
      %912 = vmatprep.subr.bf16.mxu0 0
      %913 = vmatpush2.bf16.xpose.msra.mxu0 0
      %914 = vmatprep.subr.bf16.mxu0 0
      %915 = vmatpush2.bf16.xpose.msra.mxu0 0
      %916 = vmatprep.subr.bf16.mxu0 0
      %917 = vmatpush2.bf16.xpose.msra.mxu0 0
      %918 = vmatprep.subr.bf16.mxu0 0
      %919 = vmatpush2.bf16.xpose.msra.mxu0 0
      %920 = vmatprep.subr.bf16.mxu0 0
      %921 = vmatpush2.bf16.xpose.msra.mxu0 0
      %922 = vmatprep.mubr.bf16.mxu0 0
      %923 = vmatmul.mubr.bf16.gmra.mxu0 %v885
      %v924 = vpop.f32.mrf.mxu0
      %v925 = vadd.f32 0.0, %v924
      %v926 = vpop.f32.mrf.mxu0
      %v927 = vpop.f32.mrf.mxu0
      %v928 = vpop.f32.mrf.mxu0
      %929 = vdwg.mxu0
      %v930 = vmul.f32 %v925, 0.35355338
      %v931 = vsel %vm541, %v930, -1e+30
      %v932 = vsel %vm546, %v931, -inf
      %933 = vmax.xlane.f32.xlu0 %v932
      %v934 = vpop.xlane.xlu0 %933
      %v935 = vsub.f32 %v931, %v934
      %v936 = vmul.f32 %v935, 1.442695
      %v937 = vpow.pop %v936
      %v938 = vsel %vm546, %v937, 0.0
      %939 = vadd.xlane.f32.xlu0 %v938
      %v940 = vpop.xlane.xlu0 %939
      %v941 = vrcp.pop %v940
      %v942 = vmul.f32 %v937, %v941
      %v943 = vpack.c.bf16 %v942, %v942
      %944 = vrot.lane.b32.xlu0 %v542, 40
      %v945 = vpop.permute.xlu0 %944
      %v947 = vsel %vm546, %v943, 0
      %v950 = vsel %vm612, %v945, 0
      %952 = vmatprep.subr.bf16.mxu0 0
      %953 = vmatpush1.bf16.msra.mxu0 0
      %954 = vmatprep.subr.bf16.mxu0 0
      %955 = vmatpush1.bf16.msra.mxu0 0
      %956 = vmatprep.subr.bf16.mxu0 0
      %957 = vmatpush1.bf16.msra.mxu0 0
      %958 = vmatprep.subr.bf16.mxu0 0
      %959 = vmatpush1.bf16.msra.mxu0 0
      %960 = vmatprep.subr.bf16.mxu0 0
      %961 = vmatpush1.bf16.msra.mxu0 0
      %962 = vmatprep.subr.bf16.mxu0 0
      %963 = vmatpush1.bf16.msra.mxu0 0
      %964 = vmatprep.subr.bf16.mxu0 0
      %965 = vmatpush1.bf16.msra.mxu0 0
      %966 = vmatprep.subr.bf16.mxu0 0
      %967 = vmatpush1.bf16.msra.mxu0 %v950
      %968 = vmatprep.subr.bf16.mxu0 0
      %969 = vmatpush2.bf16.msra.mxu0 0
      %970 = vmatprep.subr.bf16.mxu0 0
      %971 = vmatpush2.bf16.msra.mxu0 0
      %972 = vmatprep.subr.bf16.mxu0 0
      %973 = vmatpush2.bf16.msra.mxu0 0
      %974 = vmatprep.subr.bf16.mxu0 0
      %975 = vmatpush2.bf16.msra.mxu0 0
      %976 = vmatprep.subr.bf16.mxu0 0
      %977 = vmatpush2.bf16.msra.mxu0 0
      %978 = vmatprep.subr.bf16.mxu0 0
      %979 = vmatpush2.bf16.msra.mxu0 0
      %980 = vmatprep.subr.bf16.mxu0 0
      %981 = vmatpush2.bf16.msra.mxu0 0
      %982 = vmatprep.subr.bf16.mxu0 0
      %983 = vmatpush2.bf16.msra.mxu0 0
      %984 = vmatprep.mubr.bf16.mxu0 0
      %985 = vmatmul.mubr.bf16.gmra.mxu0 %v947
      %v986 = vpop.f32.mrf.mxu0
      %v987 = vadd.f32 0.0, %v986
      %v988 = vpop.f32.mrf.mxu0
      %v989 = vpop.f32.mrf.mxu0
      %v990 = vpop.f32.mrf.mxu0
      %991 = vdwg.mxu0
      %993 = vrot.lane.b32.xlu0 %v763, 8
      %v994 = vpop.permute.xlu0 %993
      %997 = vrot.lane.b32.xlu0 %v875, 16
      %v998 = vpop.permute.xlu0 %997
      %1001 = vrot.lane.b32.xlu0 %v987, 24
      %v1002 = vpop.permute.xlu0 %1001
      %v1004 = vsel %vm546, %v651, %v994
      %vm1005 = vcmask 130048
      %v1006 = vsel %vm1005, %v1004, %v998
      %vm1007 = vcmask 195584
      %v1008 = vsel %vm1007, %v1006, %v1002
      %v1009 = vld [vmem:[%s6] sm:$0x1]
      %v1011 = vlaneseq
      %v1012 = vshrl.u32 %v1011, 7
      %v1013 = vsub.s32 0, %v1012
      %v1014 = vrot.slane %v1009, %v1013
      %v1016 = vadd.f32 %v438, %v1014
      %v1017 = vpack.c.bf16 %v1008, %v1008
      %v1018 = vld [vmem:[%s5] sm:$0xf]
      %v1019 = vld [vmem:[%s5 + $0x4] sm:$0xf]
      %v1020 = vld [vmem:[%s5 + $0x8] sm:$0xf]
      %v1021 = vld [vmem:[%s5 + $0xc] sm:$0xf]
      %v1026 = vunpack.c.l.b16 %v1018
      %v1027 = vunpack.c.l.b16 %v1019
      %v1028 = vunpack.c.l.b16 %v1020
      %v1029 = vunpack.c.l.b16 %v1021
      %v1030 = vpack.c.b16 %v1027, %v1026
      %v1031 = vpack.c.b16 %v1029, %v1028
      %v1035 = vsel %vm441, %v1017, 0
      %1037 = vmatprep.subr.bf16.mxu0 0
      %1038 = vmatpush1.bf16.msra.mxu0 0
      %1039 = vmatprep.subr.bf16.mxu0 0
      %1040 = vmatpush1.bf16.msra.mxu0 0
      %1041 = vmatprep.subr.bf16.mxu0 0
      %1042 = vmatpush1.bf16.msra.mxu0 0
      %1043 = vmatprep.subr.bf16.mxu0 0
      %1044 = vmatpush1.bf16.msra.mxu0 0
      %1045 = vmatprep.subr.bf16.mxu0 0
      %1046 = vmatpush1.bf16.msra.mxu0 0
      %1047 = vmatprep.subr.bf16.mxu0 0
      %1048 = vmatpush1.bf16.msra.mxu0 0
      %1049 = vmatprep.subr.bf16.mxu0 0
      %1050 = vmatpush1.bf16.msra.mxu0 %v1031
      %1051 = vmatprep.subr.bf16.mxu0 0
      %1052 = vmatpush1.bf16.msra.mxu0 %v1030
      %1053 = vmatprep.subr.bf16.mxu0 0
      %1054 = vmatpush2.bf16.msra.mxu0 0
      %1055 = vmatprep.subr.bf16.mxu0 0
      %1056 = vmatpush2.bf16.msra.mxu0 0
      %1057 = vmatprep.subr.bf16.mxu0 0
      %1058 = vmatpush2.bf16.msra.mxu0 0
      %1059 = vmatprep.subr.bf16.mxu0 0
      %1060 = vmatpush2.bf16.msra.mxu0 0
      %1061 = vmatprep.subr.bf16.mxu0 0
      %1062 = vmatpush2.bf16.msra.mxu0 0
      %1063 = vmatprep.subr.bf16.mxu0 0
      %1064 = vmatpush2.bf16.msra.mxu0 0
      %1065 = vmatprep.subr.bf16.mxu0 0
      %1066 = vmatpush2.bf16.msra.mxu0 0
      %1067 = vmatprep.subr.bf16.mxu0 0
      %1068 = vmatpush2.bf16.msra.mxu0 0
      %1069 = vmatprep.mubr.bf16.mxu0 0
      %1070 = vmatmul.mubr.bf16.gmra.mxu0 %v1035
      %v1071 = vpop.f32.mrf.mxu0
      %v1072 = vadd.f32 0.0, %v1071
      %v1073 = vpop.f32.mrf.mxu0
      %v1074 = vpop.f32.mrf.mxu0
      %v1075 = vpop.f32.mrf.mxu0
      %1076 = vdwg.mxu0
      %v1077 = vadd.f32 %v1016, %v1072
      %v1078 = vld [vmem:[%s7] sm:$0x1]
      %v1079 = vld [vmem:[%s8] sm:$0x1]
      %v1080 = vsel %vm441, %v1077, 0.0
      %1081 = vadd.xlane.f32.xlu0 %v1080
      %v1082 = vpop.xlane.xlu0 %1081
      %v1083 = vmul.f32 %v1082, %v445
      %v1084 = vsub.f32 %v1077, %v1083
      %v1085 = vmul.f32 %v1084, %v1084
      %v1086 = vsel %vm441, %v1085, 0.0
      %1087 = vadd.xlane.f32.xlu0 %v1086
      %v1088 = vpop.xlane.xlu0 %1087
      %v1089 = vmul.f32 %v1088, %v445
      %v1090 = vadd.f32 %v1089, 1e-05
      %v1091 = vrsqrt.pop %v1090
      %v1092 = vmul.f32 %v1084, %v1091
      %v1094 = vlaneseq
      %v1095 = vshrl.u32 %v1094, 7
      %v1096 = vsub.s32 0, %v1095
      %v1097 = vrot.slane %v1078, %v1096
      %v1099 = vmul.f32 %v1092, %v1097
      %v1101 = vlaneseq
      %v1102 = vshrl.u32 %v1101, 7
      %v1103 = vsub.s32 0, %v1102
      %v1104 = vrot.slane %v1079, %v1103
      %v1106 = vadd.f32 %v1099, %v1104
      %v1107 = vpack.c.bf16 %v1106, %v1106
      %v1108 = vld [vmem:[%s9] sm:$0xf]
      %v1109 = vld [vmem:[%s9 + $0x4] sm:$0xf]
      %v1110 = vld [vmem:[%s9 + $0x8] sm:$0xf]
      %v1111 = vld [vmem:[%s9 + $0xc] sm:$0xf]
      %v1112 = vld [vmem:[%s10] sm:$0x1]
      %v1114 = vlaneseq
      %v1115 = vshrl.u32 %v1114, 7
      %v1116 = vsub.s32 0, %v1115
      %v1117 = vrot.slane %v1112, %v1116
      %v1123 = vunpack.c.l.b16 %v1108
      %v1124 = vunpack.c.l.b16 %v1109
      %v1125 = vunpack.c.l.b16 %v1110
      %v1126 = vunpack.c.l.b16 %v1111
      %v1127 = vpack.c.b16 %v1124, %v1123
      %v1128 = vpack.c.b16 %v1126, %v1125
      %v1132 = vsel %vm441, %v1107, 0
      %1134 = vmatprep.subr.bf16.mxu0 0
      %1135 = vmatpush1.bf16.msra.mxu0 0
      %1136 = vmatprep.subr.bf16.mxu0 0
      %1137 = vmatpush1.bf16.msra.mxu0 0
      %1138 = vmatprep.subr.bf16.mxu0 0
      %1139 = vmatpush1.bf16.msra.mxu0 0
      %1140 = vmatprep.subr.bf16.mxu0 0
      %1141 = vmatpush1.bf16.msra.mxu0 0
      %1142 = vmatprep.subr.bf16.mxu0 0
      %1143 = vmatpush1.bf16.msra.mxu0 0
      %1144 = vmatprep.subr.bf16.mxu0 0
      %1145 = vmatpush1.bf16.msra.mxu0 0
      %1146 = vmatprep.subr.bf16.mxu0 0
      %1147 = vmatpush1.bf16.msra.mxu0 %v1128
      %1148 = vmatprep.subr.bf16.mxu0 0
      %1149 = vmatpush1.bf16.msra.mxu0 %v1127
      %1150 = vmatprep.subr.bf16.mxu0 0
      %1151 = vmatpush2.bf16.msra.mxu0 0
      %1152 = vmatprep.subr.bf16.mxu0 0
      %1153 = vmatpush2.bf16.msra.mxu0 0
      %1154 = vmatprep.subr.bf16.mxu0 0
      %1155 = vmatpush2.bf16.msra.mxu0 0
      %1156 = vmatprep.subr.bf16.mxu0 0
      %1157 = vmatpush2.bf16.msra.mxu0 0
      %1158 = vmatprep.subr.bf16.mxu0 0
      %1159 = vmatpush2.bf16.msra.mxu0 0
      %1160 = vmatprep.subr.bf16.mxu0 0
      %1161 = vmatpush2.bf16.msra.mxu0 0
      %1162 = vmatprep.subr.bf16.mxu0 0
      %1163 = vmatpush2.bf16.msra.mxu0 0
      %1164 = vmatprep.subr.bf16.mxu0 0
      %1165 = vmatpush2.bf16.msra.mxu0 0
      %1166 = vmatprep.mubr.bf16.mxu0 0
      %1167 = vmatmul.mubr.bf16.gmra.mxu0 %v1132
      %v1168 = vpop.f32.mrf.mxu0
      %v1169 = vadd.f32 %v1117, %v1168
      %v1170 = vpop.f32.mrf.mxu0
      %v1171 = vpop.f32.mrf.mxu0
      %v1172 = vpop.f32.mrf.mxu0
      %1173 = vdwg.mxu0
      %v1174 = vmul.f32 %v1169, %v1169
      %v1175 = vmul.f32 %v1169, %v1174
      %v1176 = vmul.f32 %v1175, 0.044715
      %v1177 = vadd.f32 %v1169, %v1176
      %v1178 = vmul.f32 %v1177, 0.7978846
      %v1179 = vtanh.pop %v1178
      %v1180 = vadd.f32 %v1179, 1.0
      %v1181 = vmul.f32 %v1180, 0.5
      %v1182 = vmul.f32 %v1169, %v1181
      %v1183 = vld [vmem:[%s12] sm:$0x1]
      %v1185 = vlaneseq
      %v1186 = vshrl.u32 %v1185, 7
      %v1187 = vsub.s32 0, %v1186
      %v1188 = vrot.slane %v1183, %v1187
      %v1190 = vadd.f32 %v1077, %v1188
      %v1191 = vpack.c.bf16 %v1182, %v1182
      %v1192 = vld [vmem:[%s11] sm:$0xf]
      %v1193 = vld [vmem:[%s11 + $0x4] sm:$0xf]
      %v1194 = vld [vmem:[%s11 + $0x8] sm:$0xf]
      %v1195 = vld [vmem:[%s11 + $0xc] sm:$0xf]
      %v1196 = vld [vmem:[%s11 + $0x10] sm:$0xf]
      %v1197 = vld [vmem:[%s11 + $0x14] sm:$0xf]
      %v1198 = vld [vmem:[%s11 + $0x18] sm:$0xf]
      %v1199 = vld [vmem:[%s11 + $0x1c] sm:$0xf]
      %v1200 = vld [vmem:[%s11 + $0x20] sm:$0xf]
      %v1201 = vld [vmem:[%s11 + $0x24] sm:$0xf]
      %v1202 = vld [vmem:[%s11 + $0x28] sm:$0xf]
      %v1203 = vld [vmem:[%s11 + $0x2c] sm:$0xf]
      %v1204 = vld [vmem:[%s11 + $0x30] sm:$0xf]
      %v1205 = vld [vmem:[%s11 + $0x34] sm:$0xf]
      %v1206 = vld [vmem:[%s11 + $0x38] sm:$0xf]
      %v1207 = vld [vmem:[%s11 + $0x3c] sm:$0xf]
      %v1224 = vunpack.c.l.b16 %v1192
      %v1225 = vunpack.c.l.b16 %v1193
      %v1226 = vunpack.c.l.b16 %v1194
      %v1227 = vunpack.c.l.b16 %v1195
      %v1228 = vunpack.c.l.b16 %v1196
      %v1229 = vunpack.c.l.b16 %v1197
      %v1230 = vunpack.c.l.b16 %v1198
      %v1231 = vunpack.c.l.b16 %v1199
      %v1232 = vunpack.c.l.b16 %v1200
      %v1233 = vunpack.c.l.b16 %v1201
      %v1234 = vunpack.c.l.b16 %v1202
      %v1235 = vunpack.c.l.b16 %v1203
      %v1236 = vunpack.c.l.b16 %v1204
      %v1237 = vunpack.c.l.b16 %v1205
      %v1238 = vunpack.c.l.b16 %v1206
      %v1239 = vunpack.c.l.b16 %v1207
      %v1240 = vpack.c.b16 %v1225, %v1224
      %v1241 = vpack.c.b16 %v1227, %v1226
      %v1242 = vpack.c.b16 %v1229, %v1228
      %v1243 = vpack.c.b16 %v1231, %v1230
      %v1244 = vpack.c.b16 %v1233, %v1232
      %v1245 = vpack.c.b16 %v1235, %v1234
      %v1246 = vpack.c.b16 %v1237, %v1236
      %v1247 = vpack.c.b16 %v1239, %v1238
      %1256 = vmatprep.subr.bf16.mxu0 0
      %1257 = vmatpush1.bf16.msra.mxu0 %v1247
      %1258 = vmatprep.subr.bf16.mxu0 0
      %1259 = vmatpush1.bf16.msra.mxu0 %v1246
      %1260 = vmatprep.subr.bf16.mxu0 0
      %1261 = vmatpush1.bf16.msra.mxu0 %v1245
      %1262 = vmatprep.subr.bf16.mxu0 0
      %1263 = vmatpush1.bf16.msra.mxu0 %v1244
      %1264 = vmatprep.subr.bf16.mxu0 0
      %1265 = vmatpush1.bf16.msra.mxu0 %v1243
      %1266 = vmatprep.subr.bf16.mxu0 0
      %1267 = vmatpush1.bf16.msra.mxu0 %v1242
      %1268 = vmatprep.subr.bf16.mxu0 0
      %1269 = vmatpush1.bf16.msra.mxu0 %v1241
      %1270 = vmatprep.subr.bf16.mxu0 0
      %1271 = vmatpush1.bf16.msra.mxu0 %v1240
      %1272 = vmatprep.subr.bf16.mxu0 0
      %1273 = vmatpush2.bf16.msra.mxu0 0
      %1274 = vmatprep.subr.bf16.mxu0 0
      %1275 = vmatpush2.bf16.msra.mxu0 0
      %1276 = vmatprep.subr.bf16.mxu0 0
      %1277 = vmatpush2.bf16.msra.mxu0 0
      %1278 = vmatprep.subr.bf16.mxu0 0
      %1279 = vmatpush2.bf16.msra.mxu0 0
      %1280 = vmatprep.subr.bf16.mxu0 0
      %1281 = vmatpush2.bf16.msra.mxu0 0
      %1282 = vmatprep.subr.bf16.mxu0 0
      %1283 = vmatpush2.bf16.msra.mxu0 0
      %1284 = vmatprep.subr.bf16.mxu0 0
      %1285 = vmatpush2.bf16.msra.mxu0 0
      %1286 = vmatprep.subr.bf16.mxu0 0
      %1287 = vmatpush2.bf16.msra.mxu0 0
      %1288 = vmatprep.mubr.bf16.mxu0 0
      %1289 = vmatmul.mubr.bf16.gmra.mxu0 %v1191
      %v1290 = vpop.f32.mrf.mxu0
      %v1291 = vadd.f32 0.0, %v1290
      %v1292 = vpop.f32.mrf.mxu0
      %v1293 = vpop.f32.mrf.mxu0
      %v1294 = vpop.f32.mrf.mxu0
      %1295 = vdwg.mxu0
      %v1296 = vadd.f32 %v1190, %v1291
      %v1297 = vpack.c.bf16 %v1296, %v1296
      %vm1298 = vcmask 257024
      %1299 = vst.msk [vmem:[%s435] sm:$0xf] %vm1298, %v1297
      %p1300 = scmp.lt.s32.totalorder %s24, 1
      %s1301 = scalar_select %p1300, %s24, 1
      %s1302 = smul.addr %s1301, 4
      %s1303 = scalar_lea.vmem %s13, %s1302
      // Predicated region
      $region73: #{forward_batch.3} parent=71 // pred_check
        %p1304 = pneg %p320
      $region74: #{forward_batch.3} parent=71 // pred_check_branch
        %1306 = sbr.rel (%p1304) target = $region76
      $region75: #{forward_batch.3} parent=71 // pred_region
        _
      $region76: #{forward_batch.3} parent=71 // pred_fallthru
        _
    $region72: #{forward_batch.3} parent=5 // pred_fallthru
      _
    %p1307 = scmp.le.s32.totalorder 2, %s19
    // Predicated region
    $region77: #{forward_batch.3} parent=5 // pred_check
      %p1308 = pneg %p1307
    $region78: #{forward_batch.3} parent=5 // pred_check_branch
      %1310 = sbr.rel (%p1308) target = $region80
    $region79: #{forward_batch.3} parent=5 // pred_region
      %s1311 = ssub.s32 %s19, 2
      // Predicated region
      $region81: #{forward_batch.3} parent=79 // pred_check
        %p1312 = pneg %p326
      $region82: #{forward_batch.3} parent=79 // pred_check_branch
        %1314 = sbr.rel (%p1312) target = $region84
      $region83: #{forward_batch.3} parent=79 // pred_region
        %p1315 = scmp.lt.s32.totalorder %s25, 1
        %s1316 = scalar_select %p1315, %s25, 1
        %s1317 = smul.addr %s1316, 4
        %s1318 = scalar_lea.vmem %s13, %s1317
      $region84: #{forward_batch.3} parent=79 // pred_fallthru
        _
    $region80: #{forward_batch.3} parent=5 // pred_fallthru
      _
  $region6: #{forward_batch.3} parent=0 // loop_footer
    %s23 = sadd.s32 1, %s19
  $region7: #{forward_batch.3} parent=0 // loop_footer_branch
    %18 = sbr.rel target = $region3
  $region8: #{forward_batch.3} parent=0 // loop_exit
    _

</llo_original>
